<compile_context>
chip_gen: v7x
topology: tpu7x:2x2x1
jax: 0.10.0
libtpu: 0.0.40
codegen_flags: <defaults>
</compile_context>

<pallas_src>
import functools

import jax
import jax.numpy as jnp
from jax.experimental import pallas as pl
from jax.experimental.pallas import tpu as pltpu


MAX_TB = 1024  # cap on the batch tile (lanes); keeps VMEM < v5e's 16 MiB default


def _round_up(n, m):
    return ((n + m - 1) // m) * m


def _choose_tb(batch):
    """Batch-tile width (lanes).

    Big enough to amortize the ~0.35 us per-grid-step fixed cost, capped at
    1024 for v5e's scoped-VMEM default, and split so the grid has >= 2 steps
    when the batch allows it (v7x megacore: 'parallel' needs >= 2 steps).
    """
    bp = _round_up(max(batch, 1), 128)
    half = _round_up(pl.cdiv(bp, 2), 128)
    return max(128, min(MAX_TB, half))


def _layer1_dtype():
    """bf16 layer-1 math only where the VALU is bf16-capable (v6e / v7x)."""
    try:
        kind = jax.devices()[0].device_kind.lower()
    except Exception:  # pragma: no cover - conservative fallback
        return jnp.float32
    for tag in ("v6", "v7", "7x", "trillium"):
        if tag in kind:
            return jnp.bfloat16
    return jnp.float32


def _critic_kernel(xaT_ref, w1b1_ref, w2hT_ref, aux_ref, o_ref, *, acts_dtype):
    """One batch tile of the critic forward, transposed (features x batch).

    xaT_ref  : (S+1, TB)  f32   rows 0..S-1 = state features, row S = action
    w1b1_ref : (H1p, S+1) f32   cols 0..S-1 = W1 columns, col S = b1
                                (row h1 of the bias column is 1.0: constant unit)
    w2hT_ref : (H2p, H1p) bf16  W2h (torch [out,in] layout), col h1 = b2, padded
    aux_ref  : (H2p, 4)   f32   col0 = w2a (action column of W2), col1 = w3,
                                [0, 2] = b3
    o_ref    : (1, TB)    f32   Q-values for this batch tile (lane-dense)
    """
    s_dim = w1b1_ref.shape[1] - 1            # static: number of state features
    xa_f32 = xaT_ref[...]                    # (S+1, TB) f32 (tiny)
    xa = xa_f32.astype(acts_dtype)
    w1b1 = w1b1_ref[...].astype(acts_dtype)  # (H1p, S+1) (tiny cast)
    aux = aux_ref[...]                       # f32

    # ---- Layer 1 (K = 3): VPU broadcast MACs, off the MXU.  Row h1 of the
    #      bias column is 1.0 -> relu gives a constant-1 unit so b2 rides the
    #      matmul below (b2 fold: no separate bias-add pass).
    h1 = w1b1[:, s_dim:s_dim + 1]                       # bias column (H1p, 1)
    for k in range(s_dim):                              # static unroll
        h1 = h1 + w1b1[:, k:k + 1] * xa[k:k + 1, :]     # (H1p,1)*(1,TB)
    h1 = jnp.maximum(h1, 0).astype(jnp.bfloat16)        # (H1p, TB) bf16

    # ---- Layer 2: the only real matmul (512x384 contraction) on the MXU.
    #      concat + b2 folded: cat @ W2.T + b2 == W2p @ h1 + w2a * action.
    z2 = jnp.dot(w2hT_ref[...], h1,
                 preferred_element_type=jnp.float32)    # (H2p, TB) f32
    # Rank-1 action term: single VPU FMA (kept on the VPU; folding it into the
    # matmul would need a non-tile-aligned row insert into h1).
    z2 = z2 + aux[:, 0:1] * xa_f32[s_dim:s_dim + 1, :]
    h2 = jnp.maximum(z2, 0.0)

    # ---- Layer 3 (N = 1): VPU multiply + cross-sublane (XLU) reduce.
    out = jnp.sum(aux[:, 1:2] * h2, axis=0, keepdims=True) + aux[0:1, 2:3]
    o_ref[...] = out.astype(o_ref.dtype)                # (1, TB) lane-dense


def init_params(key, state_dim=3, action_dim=1, hidden_dim=(400, 300)):
    """Torch-layout params (W: [out, in], b: [out]), torch-default uniform init."""
    h1, h2 = hidden_dim
    ks = jax.random.split(key, 6)

    def lin(kw, kb, fan_in, fan_out):
        bound = 1.0 / (fan_in ** 0.5)
        w = jax.random.uniform(kw, (fan_out, fan_in), jnp.float32, -bound, bound)
        b = jax.random.uniform(kb, (fan_out,), jnp.float32, -bound, bound)
        return w, b

    w1, b1 = lin(ks[0], ks[1], state_dim, h1)
    w2, b2 = lin(ks[2], ks[3], h1 + action_dim, h2)
    w3, b3 = lin(ks[4], ks[5], h2, action_dim)
    return dict(w1=w1, b1=b1, w2=w2, b2=b2, w3=w3, b3=b3)


def prepare_params(p, state_dim=3, action_dim=1):
    """Pack / pad / cast torch-layout params into the 3 kernel weight operands."""
    assert action_dim == 1, "packed kernel layout assumes action_dim == 1"
    w1, b1, w2, b2, w3, b3 = p["w1"], p["b1"], p["w2"], p["b2"], p["w3"], p["b3"]
    h1 = w1.shape[0]
    h2 = w2.shape[0]
    h1p = _round_up(h1 + 1, 128)   # 400 -> 512; always >= 1 spare K slot for b2
    h2p = _round_up(h2, 128)       # 300 -> 384

    # [W1 columns | b1], zero-padded rows -> padded h1 units are exactly 0,
    # except row h1 (zero weights, bias 1.0) which becomes a constant-1 unit
    # after relu so that b2 can ride the MXU contraction (b2 fold).
    w1b1 = jnp.zeros((h1p, state_dim + 1), jnp.float32)
    w1b1 = w1b1.at[:h1, :state_dim].set(w1)
    w1b1 = w1b1.at[:h1, state_dim].set(b1)
    w1b1 = w1b1.at[h1, state_dim].set(1.0)

    # W2h (hidden part of W2) in torch [out, in] layout, padded, bf16;
    # column h1 carries b2 (multiplied by the constant-1 unit above).
    w2hT = jnp.zeros((h2p, h1p), jnp.float32)
    w2hT = w2hT.at[:h2, :h1].set(w2[:, :h1])
    w2hT = w2hT.at[:h2, h1].set(b2)
    w2hT = w2hT.astype(jnp.bfloat16)

    # aux: [w2a | w3 | b3 | unused], all tiny, kept f32 for precision.
    aux = jnp.zeros((h2p, 4), jnp.float32)
    aux = aux.at[:h2, 0].set(w2[:, h1])      # action column of W2
    aux = aux.at[:h2, 1].set(w3[0, :])
    aux = aux.at[0, 2].set(b3[0])

    return dict(w1b1=w1b1, w2hT=w2hT, aux=aux,
                state_dim=state_dim, action_dim=action_dim,
                acts_dtype=_layer1_dtype())


def critic_net_forward(x, action, prep):
    """x: [B, state_dim] f32, action: [B, 1] f32 -> [B, 1] f32."""
    B = x.shape[0]
    S, A = prep["state_dim"], prep["action_dim"]
    w1b1, w2hT, aux = prep["w1b1"], prep["w2hT"], prep["aux"]

    tb = _choose_tb(B)                          # up to 1024 lanes per grid step
    Bp = _round_up(B, tb)                       # pad batch to a tile multiple
    grid = (Bp // tb,)

    xa = jnp.concatenate([x, action], axis=1)   # [B, S+A]
    xaT = jnp.zeros((S + A, Bp), jnp.float32).at[:, :B].set(xa.T)

    kernel = functools.partial(_critic_kernel, acts_dtype=prep["acts_dtype"])

    out = pl.pallas_call(
        kernel,
        grid=grid,
        in_specs=[
            pl.BlockSpec((S + A, tb), lambda i: (0, i)),     # batch-tiled input
            pl.BlockSpec(w1b1.shape, lambda i: (0, 0)),      # weights stay
            pl.BlockSpec(w2hT.shape, lambda i: (0, 0)),      # resident across
            pl.BlockSpec(aux.shape, lambda i: (0, 0)),       # grid steps
        ],
        out_specs=pl.BlockSpec((1, tb), lambda i: (0, i)),   # lane-dense output
        out_shape=jax.ShapeDtypeStruct((1, Bp), jnp.float32),
        compiler_params=pltpu.CompilerParams(
            dimension_semantics=("parallel",)),              # megacore on v7x
    )(xaT, w1b1, w2hT, aux)

    return out[0, :B].reshape(B, A)


def _reference(x, action, p):
    """Plain-JAX f32 reference matching the PyTorch forward exactly."""
    h = jnp.maximum(x @ p["w1"].T + p["b1"], 0.0)
    cat = jnp.concatenate([h, action], axis=1)
    h = jnp.maximum(cat @ p["w2"].T + p["b2"], 0.0)
    return h @ p["w3"].T + p["b3"]


if __name__ == "__main__":
    key = jax.random.PRNGKey(0)
    k_x, k_a, k_p = jax.random.split(key, 3)

    B, STATE_DIM, ACTION_DIM = 2, 3, 1
    x = jax.random.normal(k_x, (B, STATE_DIM), jnp.float32)
    action = jax.random.normal(k_a, (B, ACTION_DIM), jnp.float32)

    params = init_params(k_p, STATE_DIM, ACTION_DIM, (400, 300))
    prep = prepare_params(params, STATE_DIM, ACTION_DIM)

    # Keep the wrapper packing (concat/transpose/pad) and the kernel under one
    # jit so XLA can fuse the layout ops around the pallas_call.
    fwd = jax.jit(lambda xx, aa: critic_net_forward(xx, aa, prep))
    out = jax.block_until_ready(fwd(x, action))

    ref = _reference(x, action, params)
    assert out.shape == (B, ACTION_DIM)
    # bf16 W2h (+ bf16 layer-1 math on v6e/v7x) -> looser tolerance than pure f32.
    assert jnp.allclose(out, ref, atol=2e-2, rtol=2e-2), (out, ref)

    print("KERNEL_OK")
</pallas_src>

<mosaic_0001>
module attributes {stable_mosaic.version = 11 : i64} {
  func.func @_critic_kernel(%arg0: i32, %arg1: memref<4x128xf32, #tpu.memory_space<vmem>>, %arg2: memref<512x4xf32, #tpu.memory_space<vmem>>, %arg3: memref<384x512xbf16, #tpu.memory_space<vmem>>, %arg4: memref<384x4xf32, #tpu.memory_space<vmem>>, %arg5: memref<1x128xf32, #tpu.memory_space<vmem>>) attributes {dimension_semantics = [#tpu.dimension_semantics<parallel>], iteration_bounds = array<i64: 1>, scalar_prefetch = 0 : i64, scratch_operands = 0 : i64, tpu.core_type = #tpu.core_type<tc>, window_params = [{transform_indices = @transform_0, window_bounds = array<i64: 4, 128>}, {pipeline_mode = #tpu.pipeline_mode<synchronous>, transform_indices = @transform_1, window_bounds = array<i64: 512, 4>}, {pipeline_mode = #tpu.pipeline_mode<synchronous>, transform_indices = @transform_2, window_bounds = array<i64: 384, 512>}, {pipeline_mode = #tpu.pipeline_mode<synchronous>, transform_indices = @transform_3, window_bounds = array<i64: 384, 4>}, {transform_indices = @transform_4, window_bounds = array<i64: 1, 128>}]} {
    %c0 = arith.constant 0 : index
    %c0_0 = arith.constant 0 : index
    %0 = vector.load %arg1[%c0, %c0_0] : memref<4x128xf32, #tpu.memory_space<vmem>>, vector<4x128xf32>
    %c0_1 = arith.constant 0 : index
    %c0_2 = arith.constant 0 : index
    %1 = vector.load %arg2[%c0_1, %c0_2] : memref<512x4xf32, #tpu.memory_space<vmem>>, vector<512x4xf32>
    %c0_3 = arith.constant 0 : index
    %c0_4 = arith.constant 0 : index
    %2 = vector.load %arg4[%c0_3, %c0_4] : memref<384x4xf32, #tpu.memory_space<vmem>>, vector<384x4xf32>
    %3 = vector.extract_strided_slice %1 {offsets = [0, 3], sizes = [512, 1], strides = [1, 1]} : vector<512x4xf32> to vector<512x1xf32>
    %4 = vector.extract_strided_slice %1 {offsets = [0, 0], sizes = [512, 1], strides = [1, 1]} : vector<512x4xf32> to vector<512x1xf32>
    %5 = vector.extract_strided_slice %0 {offsets = [0, 0], sizes = [1, 128], strides = [1, 1]} : vector<4x128xf32> to vector<1x128xf32>
    %6 = vector.broadcast %4 : vector<512x1xf32> to vector<512x128xf32>
    %7 = vector.broadcast %5 : vector<1x128xf32> to vector<512x128xf32>
    %8 = arith.mulf %6, %7 : vector<512x128xf32>
    %9 = vector.broadcast %3 : vector<512x1xf32> to vector<512x128xf32>
    %10 = arith.addf %9, %8 : vector<512x128xf32>
    %11 = vector.extract_strided_slice %1 {offsets = [0, 1], sizes = [512, 1], strides = [1, 1]} : vector<512x4xf32> to vector<512x1xf32>
    %12 = vector.extract_strided_slice %0 {offsets = [1, 0], sizes = [1, 128], strides = [1, 1]} : vector<4x128xf32> to vector<1x128xf32>
    %13 = vector.broadcast %11 : vector<512x1xf32> to vector<512x128xf32>
    %14 = vector.broadcast %12 : vector<1x128xf32> to vector<512x128xf32>
    %15 = arith.mulf %13, %14 : vector<512x128xf32>
    %16 = arith.addf %10, %15 : vector<512x128xf32>
    %17 = vector.extract_strided_slice %1 {offsets = [0, 2], sizes = [512, 1], strides = [1, 1]} : vector<512x4xf32> to vector<512x1xf32>
    %18 = vector.extract_strided_slice %0 {offsets = [2, 0], sizes = [1, 128], strides = [1, 1]} : vector<4x128xf32> to vector<1x128xf32>
    %19 = vector.broadcast %17 : vector<512x1xf32> to vector<512x128xf32>
    %20 = vector.broadcast %18 : vector<1x128xf32> to vector<512x128xf32>
    %21 = arith.mulf %19, %20 : vector<512x128xf32>
    %22 = arith.addf %16, %21 : vector<512x128xf32>
    %cst = arith.constant 0.000000e+00 : f32
    %23 = vector.broadcast %cst : f32 to vector<512x128xf32>
    %24 = arith.maximumf %22, %23 : vector<512x128xf32>
    %25 = arith.truncf %24 : vector<512x128xf32> to vector<512x128xbf16>
    %c0_5 = arith.constant 0 : index
    %c0_6 = arith.constant 0 : index
    %26 = vector.load %arg3[%c0_5, %c0_6] : memref<384x512xbf16, #tpu.memory_space<vmem>>, vector<384x512xbf16>
    %cst_7 = arith.constant dense<0.000000e+00> : vector<384x128xf32>
    %27 = tpu.matmul %26, %25, %cst_7 {dimension_numbers = #tpu.dot_dimension_numbers<[1], [0], [0], [1], [0, 0, 1, 1], [], []>} : vector<384x512xbf16>, vector<512x128xbf16>, vector<384x128xf32> -> vector<384x128xf32>
    %28 = vector.extract_strided_slice %2 {offsets = [0, 0], sizes = [384, 1], strides = [1, 1]} : vector<384x4xf32> to vector<384x1xf32>
    %29 = vector.extract_strided_slice %0 {offsets = [3, 0], sizes = [1, 128], strides = [1, 1]} : vector<4x128xf32> to vector<1x128xf32>
    %30 = vector.broadcast %28 : vector<384x1xf32> to vector<384x128xf32>
    %31 = vector.broadcast %29 : vector<1x128xf32> to vector<384x128xf32>
    %32 = arith.mulf %30, %31 : vector<384x128xf32>
    %33 = arith.addf %27, %32 : vector<384x128xf32>
    %cst_8 = arith.constant 0.000000e+00 : f32
    %34 = vector.broadcast %cst_8 : f32 to vector<384x128xf32>
    %35 = arith.maximumf %33, %34 : vector<384x128xf32>
    %36 = vector.extract_strided_slice %2 {offsets = [0, 1], sizes = [384, 1], strides = [1, 1]} : vector<384x4xf32> to vector<384x1xf32>
    %37 = vector.broadcast %36 : vector<384x1xf32> to vector<384x128xf32>
    %38 = arith.mulf %37, %35 : vector<384x128xf32>
    %cst_9 = arith.constant dense<0.000000e+00> : vector<128xf32>
    %39 = vector.multi_reduction <add>, %38, %cst_9 [0] : vector<384x128xf32> to vector<128xf32>
    %40 = vector.shape_cast %39 : vector<128xf32> to vector<1x128xf32>
    %41 = vector.extract_strided_slice %2 {offsets = [0, 2], sizes = [1, 1], strides = [1, 1]} : vector<384x4xf32> to vector<1x1xf32>
    %42 = vector.broadcast %41 : vector<1x1xf32> to vector<1x128xf32>
    %43 = arith.addf %40, %42 : vector<1x128xf32>
    %c0_10 = arith.constant 0 : index
    %c0_11 = arith.constant 0 : index
    %44 = vector.load %arg5[%c0_10, %c0_11] : memref<1x128xf32, #tpu.memory_space<vmem>>, vector<1x128xf32>
    tpu.vector_store %arg5[%c0_10, %c0_11], %43 {strides = array<i32>} : memref<1x128xf32, #tpu.memory_space<vmem>>, vector<1x128xf32>,
    return
  }
  func.func @transform_0(%arg0: i32) -> (i32, i32) {
    %c0_i32 = arith.constant 0 : i32
    %c0_i32_0 = arith.constant 0 : i32
    return %c0_i32, %arg0 : i32, i32
  }
  func.func @transform_1(%arg0: i32) -> (i32, i32) {
    %c0_i32 = arith.constant 0 : i32
    %c0_i32_0 = arith.constant 0 : i32
    %c0_i32_1 = arith.constant 0 : i32
    return %c0_i32, %c0_i32_0 : i32, i32
  }
  func.func @transform_2(%arg0: i32) -> (i32, i32) {
    %c0_i32 = arith.constant 0 : i32
    %c0_i32_0 = arith.constant 0 : i32
    %c0_i32_1 = arith.constant 0 : i32
    return %c0_i32, %c0_i32_0 : i32, i32
  }
  func.func @transform_3(%arg0: i32) -> (i32, i32) {
    %c0_i32 = arith.constant 0 : i32
    %c0_i32_0 = arith.constant 0 : i32
    %c0_i32_1 = arith.constant 0 : i32
    return %c0_i32, %c0_i32_0 : i32, i32
  }
  func.func @transform_4(%arg0: i32) -> (i32, i32) {
    %c0_i32 = arith.constant 0 : i32
    %c0_i32_0 = arith.constant 0 : i32
    return %c0_i32, %arg0 : i32, i32
  }
}

</mosaic_0001>

<llo_original>
// kernel: _lambda_.1
$region0: #{_lambda_.1}
  #allocation0 [shape = 'u32[]', space=smem, size = 0x4, offset = 0x4, fixed_abs, tag = 'smem constant byte address 0x4 - core index']
  #allocation1 [shape = 'u32[144,128]{1,0:T(1,128)}', space=vmem, size = 0x12000, scoped, tag = 'internal scratch']
  %s0 = inlined_call_operand.vmem [shape: f32[4,128], index: 0, kind: input, shape index: {}]
  %s1 = inlined_call_operand.vmem [shape: f32[512,4], index: 1, kind: input, shape index: {}]
  %s2 = inlined_call_operand.vmem [shape: bf16[384,512], index: 2, kind: input, shape index: {}]
  %s3 = inlined_call_operand.vmem [shape: f32[384,4], index: 3, kind: input, shape index: {}]
  %s4 = inlined_call_operand.vmem [shape: f32[1,128], index: 4, kind: output, shape index: {}]
  %s5 = sld [smem:[#allocation0]]
  $region26: #{_lambda_.1} parent=0
    _
  %s7 = ssub.s32 1, %s5
  %s8 = scalar_select 0, %s7, %s5
  // Predicated region
  $region2: #{_lambda_.1} parent=0 // pred_check
    _
  $region3: #{_lambda_.1} parent=0 // pred_check_branch
    %10 = sbr.rel (0) target = $region5
  $region4: #{_lambda_.1} parent=0 // pred_region
    _
  $region5: #{_lambda_.1} parent=0 // pred_fallthru
    _
  // Predicated region
  $region6: #{_lambda_.1} parent=0 // pred_check
    _
  $region7: #{_lambda_.1} parent=0 // pred_check_branch
    %12 = sbr.rel (0) target = $region9
  $region8: #{_lambda_.1} parent=0 // pred_region
    _
  $region9: #{_lambda_.1} parent=0 // pred_fallthru
    _
  // Predicated region
  $region10: #{_lambda_.1} parent=0 // pred_check
    _
  $region11: #{_lambda_.1} parent=0 // pred_check_branch
    %14 = sbr.rel (0) target = $region13
  $region12: #{_lambda_.1} parent=0 // pred_region
    _
  $region13: #{_lambda_.1} parent=0 // pred_fallthru
    _
  // Predicated region
  $region14: #{_lambda_.1} parent=0 // pred_check
    _
  $region15: #{_lambda_.1} parent=0 // pred_check_branch
    %16 = sbr.rel (0) target = $region17
  $region16: #{_lambda_.1} parent=0 // pred_region
    _
  $region17: #{_lambda_.1} parent=0 // pred_fallthru
    _
  %v18 = vld [vmem:[%s0] sm:$0xf]
  %v19 = vld [vmem:[%s1] sm:$0xff]
  %v20 = vld [vmem:[%s1 + $0x8] sm:$0xff]
  %v21 = vld [vmem:[%s1 + $0x10] sm:$0xff]
  %v22 = vld [vmem:[%s1 + $0x18] sm:$0xff]
  %v23 = vld [vmem:[%s1 + $0x20] sm:$0xff]
  %v24 = vld [vmem:[%s1 + $0x28] sm:$0xff]
  %v25 = vld [vmem:[%s1 + $0x30] sm:$0xff]
  %v26 = vld [vmem:[%s1 + $0x38] sm:$0xff]
  %v27 = vld [vmem:[%s1 + $0x40] sm:$0xff]
  %v28 = vld [vmem:[%s1 + $0x48] sm:$0xff]
  %v29 = vld [vmem:[%s1 + $0x50] sm:$0xff]
  %v30 = vld [vmem:[%s1 + $0x58] sm:$0xff]
  %v31 = vld [vmem:[%s1 + $0x60] sm:$0xff]
  %v32 = vld [vmem:[%s1 + $0x68] sm:$0xff]
  %v33 = vld [vmem:[%s1 + $0x70] sm:$0xff]
  %v34 = vld [vmem:[%s1 + $0x78] sm:$0xff]
  %v35 = vld [vmem:[%s1 + $0x80] sm:$0xff]
  %v36 = vld [vmem:[%s1 + $0x88] sm:$0xff]
  %v37 = vld [vmem:[%s1 + $0x90] sm:$0xff]
  %v38 = vld [vmem:[%s1 + $0x98] sm:$0xff]
  %v39 = vld [vmem:[%s1 + $0xa0] sm:$0xff]
  %v40 = vld [vmem:[%s1 + $0xa8] sm:$0xff]
  %v41 = vld [vmem:[%s1 + $0xb0] sm:$0xff]
  %v42 = vld [vmem:[%s1 + $0xb8] sm:$0xff]
  %v43 = vld [vmem:[%s1 + $0xc0] sm:$0xff]
  %v44 = vld [vmem:[%s1 + $0xc8] sm:$0xff]
  %v45 = vld [vmem:[%s1 + $0xd0] sm:$0xff]
  %v46 = vld [vmem:[%s1 + $0xd8] sm:$0xff]
  %v47 = vld [vmem:[%s1 + $0xe0] sm:$0xff]
  %v48 = vld [vmem:[%s1 + $0xe8] sm:$0xff]
  %v49 = vld [vmem:[%s1 + $0xf0] sm:$0xff]
  %v50 = vld [vmem:[%s1 + $0xf8] sm:$0xff]
  %v51 = vld [vmem:[%s1 + $0x100] sm:$0xff]
  %v52 = vld [vmem:[%s1 + $0x108] sm:$0xff]
  %v53 = vld [vmem:[%s1 + $0x110] sm:$0xff]
  %v54 = vld [vmem:[%s1 + $0x118] sm:$0xff]
  %v55 = vld [vmem:[%s1 + $0x120] sm:$0xff]
  %v56 = vld [vmem:[%s1 + $0x128] sm:$0xff]
  %v57 = vld [vmem:[%s1 + $0x130] sm:$0xff]
  %v58 = vld [vmem:[%s1 + $0x138] sm:$0xff]
  %v59 = vld [vmem:[%s1 + $0x140] sm:$0xff]
  %v60 = vld [vmem:[%s1 + $0x148] sm:$0xff]
  %v61 = vld [vmem:[%s1 + $0x150] sm:$0xff]
  %v62 = vld [vmem:[%s1 + $0x158] sm:$0xff]
  %v63 = vld [vmem:[%s1 + $0x160] sm:$0xff]
  %v64 = vld [vmem:[%s1 + $0x168] sm:$0xff]
  %v65 = vld [vmem:[%s1 + $0x170] sm:$0xff]
  %v66 = vld [vmem:[%s1 + $0x178] sm:$0xff]
  %v67 = vld [vmem:[%s1 + $0x180] sm:$0xff]
  %v68 = vld [vmem:[%s1 + $0x188] sm:$0xff]
  %v69 = vld [vmem:[%s1 + $0x190] sm:$0xff]
  %v70 = vld [vmem:[%s1 + $0x198] sm:$0xff]
  %v71 = vld [vmem:[%s1 + $0x1a0] sm:$0xff]
  %v72 = vld [vmem:[%s1 + $0x1a8] sm:$0xff]
  %v73 = vld [vmem:[%s1 + $0x1b0] sm:$0xff]
  %v74 = vld [vmem:[%s1 + $0x1b8] sm:$0xff]
  %v75 = vld [vmem:[%s1 + $0x1c0] sm:$0xff]
  %v76 = vld [vmem:[%s1 + $0x1c8] sm:$0xff]
  %v77 = vld [vmem:[%s1 + $0x1d0] sm:$0xff]
  %v78 = vld [vmem:[%s1 + $0x1d8] sm:$0xff]
  %v79 = vld [vmem:[%s1 + $0x1e0] sm:$0xff]
  %v80 = vld [vmem:[%s1 + $0x1e8] sm:$0xff]
  %v81 = vld [vmem:[%s1 + $0x1f0] sm:$0xff]
  %v82 = vld [vmem:[%s1 + $0x1f8] sm:$0xff]
  %v83 = vld [vmem:[%s3] sm:$0xff]
  %v84 = vld [vmem:[%s3 + $0x8] sm:$0xff]
  %v85 = vld [vmem:[%s3 + $0x10] sm:$0xff]
  %v86 = vld [vmem:[%s3 + $0x18] sm:$0xff]
  %v87 = vld [vmem:[%s3 + $0x20] sm:$0xff]
  %v88 = vld [vmem:[%s3 + $0x28] sm:$0xff]
  %v89 = vld [vmem:[%s3 + $0x30] sm:$0xff]
  %v90 = vld [vmem:[%s3 + $0x38] sm:$0xff]
  %v91 = vld [vmem:[%s3 + $0x40] sm:$0xff]
  %v92 = vld [vmem:[%s3 + $0x48] sm:$0xff]
  %v93 = vld [vmem:[%s3 + $0x50] sm:$0xff]
  %v94 = vld [vmem:[%s3 + $0x58] sm:$0xff]
  %v95 = vld [vmem:[%s3 + $0x60] sm:$0xff]
  %v96 = vld [vmem:[%s3 + $0x68] sm:$0xff]
  %v97 = vld [vmem:[%s3 + $0x70] sm:$0xff]
  %v98 = vld [vmem:[%s3 + $0x78] sm:$0xff]
  %v99 = vld [vmem:[%s3 + $0x80] sm:$0xff]
  %v100 = vld [vmem:[%s3 + $0x88] sm:$0xff]
  %v101 = vld [vmem:[%s3 + $0x90] sm:$0xff]
  %v102 = vld [vmem:[%s3 + $0x98] sm:$0xff]
  %v103 = vld [vmem:[%s3 + $0xa0] sm:$0xff]
  %v104 = vld [vmem:[%s3 + $0xa8] sm:$0xff]
  %v105 = vld [vmem:[%s3 + $0xb0] sm:$0xff]
  %v106 = vld [vmem:[%s3 + $0xb8] sm:$0xff]
  %v107 = vld [vmem:[%s3 + $0xc0] sm:$0xff]
  %v108 = vld [vmem:[%s3 + $0xc8] sm:$0xff]
  %v109 = vld [vmem:[%s3 + $0xd0] sm:$0xff]
  %v110 = vld [vmem:[%s3 + $0xd8] sm:$0xff]
  %v111 = vld [vmem:[%s3 + $0xe0] sm:$0xff]
  %v112 = vld [vmem:[%s3 + $0xe8] sm:$0xff]
  %v113 = vld [vmem:[%s3 + $0xf0] sm:$0xff]
  %v114 = vld [vmem:[%s3 + $0xf8] sm:$0xff]
  %v115 = vld [vmem:[%s3 + $0x100] sm:$0xff]
  %v116 = vld [vmem:[%s3 + $0x108] sm:$0xff]
  %v117 = vld [vmem:[%s3 + $0x110] sm:$0xff]
  %v118 = vld [vmem:[%s3 + $0x118] sm:$0xff]
  %v119 = vld [vmem:[%s3 + $0x120] sm:$0xff]
  %v120 = vld [vmem:[%s3 + $0x128] sm:$0xff]
  %v121 = vld [vmem:[%s3 + $0x130] sm:$0xff]
  %v122 = vld [vmem:[%s3 + $0x138] sm:$0xff]
  %v123 = vld [vmem:[%s3 + $0x140] sm:$0xff]
  %v124 = vld [vmem:[%s3 + $0x148] sm:$0xff]
  %v125 = vld [vmem:[%s3 + $0x150] sm:$0xff]
  %v126 = vld [vmem:[%s3 + $0x158] sm:$0xff]
  %v127 = vld [vmem:[%s3 + $0x160] sm:$0xff]
  %v128 = vld [vmem:[%s3 + $0x168] sm:$0xff]
  %v129 = vld [vmem:[%s3 + $0x170] sm:$0xff]
  %v130 = vld [vmem:[%s3 + $0x178] sm:$0xff]
  %132 = vset.pattern.permute.xlu0 0
  %133 = vperm.xlu0 %132, %v19
  %v134 = vpop.permute.xlu0 %133
  %137 = vset.pattern.permute.xlu0 0
  %138 = vperm.xlu0 %137, %v20
  %v139 = vpop.permute.xlu0 %138
  %142 = vset.pattern.permute.xlu0 0
  %143 = vperm.xlu0 %142, %v21
  %v144 = vpop.permute.xlu0 %143
  %147 = vset.pattern.permute.xlu0 0
  %148 = vperm.xlu0 %147, %v22
  %v149 = vpop.permute.xlu0 %148
  %152 = vset.pattern.permute.xlu0 0
  %153 = vperm.xlu0 %152, %v23
  %v154 = vpop.permute.xlu0 %153
  %157 = vset.pattern.permute.xlu0 0
  %158 = vperm.xlu0 %157, %v24
  %v159 = vpop.permute.xlu0 %158
  %162 = vset.pattern.permute.xlu0 0
  %163 = vperm.xlu0 %162, %v25
  %v164 = vpop.permute.xlu0 %163
  %167 = vset.pattern.permute.xlu0 0
  %168 = vperm.xlu0 %167, %v26
  %v169 = vpop.permute.xlu0 %168
  %172 = vset.pattern.permute.xlu0 0
  %173 = vperm.xlu0 %172, %v27
  %v174 = vpop.permute.xlu0 %173
  %177 = vset.pattern.permute.xlu0 0
  %178 = vperm.xlu0 %177, %v28
  %v179 = vpop.permute.xlu0 %178
  %182 = vset.pattern.permute.xlu0 0
  %183 = vperm.xlu0 %182, %v29
  %v184 = vpop.permute.xlu0 %183
  %187 = vset.pattern.permute.xlu0 0
  %188 = vperm.xlu0 %187, %v30
  %v189 = vpop.permute.xlu0 %188
  %192 = vset.pattern.permute.xlu0 0
  %193 = vperm.xlu0 %192, %v31
  %v194 = vpop.permute.xlu0 %193
  %197 = vset.pattern.permute.xlu0 0
  %198 = vperm.xlu0 %197, %v32
  %v199 = vpop.permute.xlu0 %198
  %202 = vset.pattern.permute.xlu0 0
  %203 = vperm.xlu0 %202, %v33
  %v204 = vpop.permute.xlu0 %203
  %207 = vset.pattern.permute.xlu0 0
  %208 = vperm.xlu0 %207, %v34
  %v209 = vpop.permute.xlu0 %208
  %212 = vset.pattern.permute.xlu0 0
  %213 = vperm.xlu0 %212, %v35
  %v214 = vpop.permute.xlu0 %213
  %217 = vset.pattern.permute.xlu0 0
  %218 = vperm.xlu0 %217, %v36
  %v219 = vpop.permute.xlu0 %218
  %222 = vset.pattern.permute.xlu0 0
  %223 = vperm.xlu0 %222, %v37
  %v224 = vpop.permute.xlu0 %223
  %227 = vset.pattern.permute.xlu0 0
  %228 = vperm.xlu0 %227, %v38
  %v229 = vpop.permute.xlu0 %228
  %232 = vset.pattern.permute.xlu0 0
  %233 = vperm.xlu0 %232, %v39
  %v234 = vpop.permute.xlu0 %233
  %237 = vset.pattern.permute.xlu0 0
  %238 = vperm.xlu0 %237, %v40
  %v239 = vpop.permute.xlu0 %238
  %242 = vset.pattern.permute.xlu0 0
  %243 = vperm.xlu0 %242, %v41
  %v244 = vpop.permute.xlu0 %243
  %247 = vset.pattern.permute.xlu0 0
  %248 = vperm.xlu0 %247, %v42
  %v249 = vpop.permute.xlu0 %248
  %252 = vset.pattern.permute.xlu0 0
  %253 = vperm.xlu0 %252, %v43
  %v254 = vpop.permute.xlu0 %253
  %257 = vset.pattern.permute.xlu0 0
  %258 = vperm.xlu0 %257, %v44
  %v259 = vpop.permute.xlu0 %258
  %262 = vset.pattern.permute.xlu0 0
  %263 = vperm.xlu0 %262, %v45
  %v264 = vpop.permute.xlu0 %263
  %267 = vset.pattern.permute.xlu0 0
  %268 = vperm.xlu0 %267, %v46
  %v269 = vpop.permute.xlu0 %268
  %272 = vset.pattern.permute.xlu0 0
  %273 = vperm.xlu0 %272, %v47
  %v274 = vpop.permute.xlu0 %273
  %277 = vset.pattern.permute.xlu0 0
  %278 = vperm.xlu0 %277, %v48
  %v279 = vpop.permute.xlu0 %278
  %282 = vset.pattern.permute.xlu0 0
  %283 = vperm.xlu0 %282, %v49
  %v284 = vpop.permute.xlu0 %283
  %287 = vset.pattern.permute.xlu0 0
  %288 = vperm.xlu0 %287, %v50
  %v289 = vpop.permute.xlu0 %288
  %292 = vset.pattern.permute.xlu0 0
  %293 = vperm.xlu0 %292, %v51
  %v294 = vpop.permute.xlu0 %293
  %297 = vset.pattern.permute.xlu0 0
  %298 = vperm.xlu0 %297, %v52
  %v299 = vpop.permute.xlu0 %298
  %302 = vset.pattern.permute.xlu0 0
  %303 = vperm.xlu0 %302, %v53
  %v304 = vpop.permute.xlu0 %303
  %307 = vset.pattern.permute.xlu0 0
  %308 = vperm.xlu0 %307, %v54
  %v309 = vpop.permute.xlu0 %308
  %312 = vset.pattern.permute.xlu0 0
  %313 = vperm.xlu0 %312, %v55
  %v314 = vpop.permute.xlu0 %313
  %317 = vset.pattern.permute.xlu0 0
  %318 = vperm.xlu0 %317, %v56
  %v319 = vpop.permute.xlu0 %318
  %322 = vset.pattern.permute.xlu0 0
  %323 = vperm.xlu0 %322, %v57
  %v324 = vpop.permute.xlu0 %323
  %327 = vset.pattern.permute.xlu0 0
  %328 = vperm.xlu0 %327, %v58
  %v329 = vpop.permute.xlu0 %328
  %332 = vset.pattern.permute.xlu0 0
  %333 = vperm.xlu0 %332, %v59
  %v334 = vpop.permute.xlu0 %333
  %337 = vset.pattern.permute.xlu0 0
  %338 = vperm.xlu0 %337, %v60
  %v339 = vpop.permute.xlu0 %338
  %342 = vset.pattern.permute.xlu0 0
  %343 = vperm.xlu0 %342, %v61
  %v344 = vpop.permute.xlu0 %343
  %347 = vset.pattern.permute.xlu0 0
  %348 = vperm.xlu0 %347, %v62
  %v349 = vpop.permute.xlu0 %348
  %352 = vset.pattern.permute.xlu0 0
  %353 = vperm.xlu0 %352, %v63
  %v354 = vpop.permute.xlu0 %353
  %357 = vset.pattern.permute.xlu0 0
  %358 = vperm.xlu0 %357, %v64
  %v359 = vpop.permute.xlu0 %358
  %362 = vset.pattern.permute.xlu0 0
  %363 = vperm.xlu0 %362, %v65
  %v364 = vpop.permute.xlu0 %363
  %367 = vset.pattern.permute.xlu0 0
  %368 = vperm.xlu0 %367, %v66
  %v369 = vpop.permute.xlu0 %368
  %372 = vset.pattern.permute.xlu0 0
  %373 = vperm.xlu0 %372, %v67
  %v374 = vpop.permute.xlu0 %373
  %377 = vset.pattern.permute.xlu0 0
  %378 = vperm.xlu0 %377, %v68
  %v379 = vpop.permute.xlu0 %378
  %382 = vset.pattern.permute.xlu0 0
  %383 = vperm.xlu0 %382, %v69
  %v384 = vpop.permute.xlu0 %383
  %387 = vset.pattern.permute.xlu0 0
  %388 = vperm.xlu0 %387, %v70
  %v389 = vpop.permute.xlu0 %388
  %392 = vset.pattern.permute.xlu0 0
  %393 = vperm.xlu0 %392, %v71
  %v394 = vpop.permute.xlu0 %393
  %397 = vset.pattern.permute.xlu0 0
  %398 = vperm.xlu0 %397, %v72
  %v399 = vpop.permute.xlu0 %398
  %402 = vset.pattern.permute.xlu0 0
  %403 = vperm.xlu0 %402, %v73
  %v404 = vpop.permute.xlu0 %403
  %407 = vset.pattern.permute.xlu0 0
  %408 = vperm.xlu0 %407, %v74
  %v409 = vpop.permute.xlu0 %408
  %412 = vset.pattern.permute.xlu0 0
  %413 = vperm.xlu0 %412, %v75
  %v414 = vpop.permute.xlu0 %413
  %417 = vset.pattern.permute.xlu0 0
  %418 = vperm.xlu0 %417, %v76
  %v419 = vpop.permute.xlu0 %418
  %422 = vset.pattern.permute.xlu0 0
  %423 = vperm.xlu0 %422, %v77
  %v424 = vpop.permute.xlu0 %423
  %427 = vset.pattern.permute.xlu0 0
  %428 = vperm.xlu0 %427, %v78
  %v429 = vpop.permute.xlu0 %428
  %432 = vset.pattern.permute.xlu0 0
  %433 = vperm.xlu0 %432, %v79
  %v434 = vpop.permute.xlu0 %433
  %437 = vset.pattern.permute.xlu0 0
  %438 = vperm.xlu0 %437, %v80
  %v439 = vpop.permute.xlu0 %438
  %442 = vset.pattern.permute.xlu0 0
  %443 = vperm.xlu0 %442, %v81
  %v444 = vpop.permute.xlu0 %443
  %447 = vset.pattern.permute.xlu0 0
  %448 = vperm.xlu0 %447, %v82
  %v449 = vpop.permute.xlu0 %448
  %v451 = vlaneseq
  %v452 = vshrl.u32 %v451, 7
  %v453 = vsub.s32 0, %v452
  %v454 = vrot.slane %v18, %v453
  %v455 = vmul.f32 %v134, %v454
  %v456 = vmul.f32 %v139, %v454
  %v457 = vmul.f32 %v144, %v454
  %v458 = vmul.f32 %v149, %v454
  %v459 = vmul.f32 %v154, %v454
  %v460 = vmul.f32 %v159, %v454
  %v461 = vmul.f32 %v164, %v454
  %v462 = vmul.f32 %v169, %v454
  %v463 = vmul.f32 %v174, %v454
  %v464 = vmul.f32 %v179, %v454
  %v465 = vmul.f32 %v184, %v454
  %v466 = vmul.f32 %v189, %v454
  %v467 = vmul.f32 %v194, %v454
  %v468 = vmul.f32 %v199, %v454
  %v469 = vmul.f32 %v204, %v454
  %v470 = vmul.f32 %v209, %v454
  %v471 = vmul.f32 %v214, %v454
  %v472 = vmul.f32 %v219, %v454
  %v473 = vmul.f32 %v224, %v454
  %v474 = vmul.f32 %v229, %v454
  %v475 = vmul.f32 %v234, %v454
  %v476 = vmul.f32 %v239, %v454
  %v477 = vmul.f32 %v244, %v454
  %v478 = vmul.f32 %v249, %v454
  %v479 = vmul.f32 %v254, %v454
  %v480 = vmul.f32 %v259, %v454
  %v481 = vmul.f32 %v264, %v454
  %v482 = vmul.f32 %v269, %v454
  %v483 = vmul.f32 %v274, %v454
  %v484 = vmul.f32 %v279, %v454
  %v485 = vmul.f32 %v284, %v454
  %v486 = vmul.f32 %v289, %v454
  %v487 = vmul.f32 %v294, %v454
  %v488 = vmul.f32 %v299, %v454
  %v489 = vmul.f32 %v304, %v454
  %v490 = vmul.f32 %v309, %v454
  %v491 = vmul.f32 %v314, %v454
  %v492 = vmul.f32 %v319, %v454
  %v493 = vmul.f32 %v324, %v454
  %v494 = vmul.f32 %v329, %v454
  %v495 = vmul.f32 %v334, %v454
  %v496 = vmul.f32 %v339, %v454
  %v497 = vmul.f32 %v344, %v454
  %v498 = vmul.f32 %v349, %v454
  %v499 = vmul.f32 %v354, %v454
  %v500 = vmul.f32 %v359, %v454
  %v501 = vmul.f32 %v364, %v454
  %v502 = vmul.f32 %v369, %v454
  %v503 = vmul.f32 %v374, %v454
  %v504 = vmul.f32 %v379, %v454
  %v505 = vmul.f32 %v384, %v454
  %v506 = vmul.f32 %v389, %v454
  %v507 = vmul.f32 %v394, %v454
  %v508 = vmul.f32 %v399, %v454
  %v509 = vmul.f32 %v404, %v454
  %v510 = vmul.f32 %v409, %v454
  %v511 = vmul.f32 %v414, %v454
  %v512 = vmul.f32 %v419, %v454
  %v513 = vmul.f32 %v424, %v454
  %v514 = vmul.f32 %v429, %v454
  %v515 = vmul.f32 %v434, %v454
  %v516 = vmul.f32 %v439, %v454
  %v517 = vmul.f32 %v444, %v454
  %v518 = vmul.f32 %v449, %v454
  %519 = vset.pattern.permute.xlu0 3
  %520 = vperm.xlu0 %519, %v19
  %v521 = vpop.permute.xlu0 %520
  %523 = vset.pattern.permute.xlu0 3
  %524 = vperm.xlu0 %523, %v20
  %v525 = vpop.permute.xlu0 %524
  %527 = vset.pattern.permute.xlu0 3
  %528 = vperm.xlu0 %527, %v21
  %v529 = vpop.permute.xlu0 %528
  %531 = vset.pattern.permute.xlu0 3
  %532 = vperm.xlu0 %531, %v22
  %v533 = vpop.permute.xlu0 %532
  %535 = vset.pattern.permute.xlu0 3
  %536 = vperm.xlu0 %535, %v23
  %v537 = vpop.permute.xlu0 %536
  %539 = vset.pattern.permute.xlu0 3
  %540 = vperm.xlu0 %539, %v24
  %v541 = vpop.permute.xlu0 %540
  %543 = vset.pattern.permute.xlu0 3
  %544 = vperm.xlu0 %543, %v25
  %v545 = vpop.permute.xlu0 %544
  %547 = vset.pattern.permute.xlu0 3
  %548 = vperm.xlu0 %547, %v26
  %v549 = vpop.permute.xlu0 %548
  %551 = vset.pattern.permute.xlu0 3
  %552 = vperm.xlu0 %551, %v27
  %v553 = vpop.permute.xlu0 %552
  %555 = vset.pattern.permute.xlu0 3
  %556 = vperm.xlu0 %555, %v28
  %v557 = vpop.permute.xlu0 %556
  %559 = vset.pattern.permute.xlu0 3
  %560 = vperm.xlu0 %559, %v29
  %v561 = vpop.permute.xlu0 %560
  %563 = vset.pattern.permute.xlu0 3
  %564 = vperm.xlu0 %563, %v30
  %v565 = vpop.permute.xlu0 %564
  %567 = vset.pattern.permute.xlu0 3
  %568 = vperm.xlu0 %567, %v31
  %v569 = vpop.permute.xlu0 %568
  %571 = vset.pattern.permute.xlu0 3
  %572 = vperm.xlu0 %571, %v32
  %v573 = vpop.permute.xlu0 %572
  %575 = vset.pattern.permute.xlu0 3
  %576 = vperm.xlu0 %575, %v33
  %v577 = vpop.permute.xlu0 %576
  %579 = vset.pattern.permute.xlu0 3
  %580 = vperm.xlu0 %579, %v34
  %v581 = vpop.permute.xlu0 %580
  %583 = vset.pattern.permute.xlu0 3
  %584 = vperm.xlu0 %583, %v35
  %v585 = vpop.permute.xlu0 %584
  %587 = vset.pattern.permute.xlu0 3
  %588 = vperm.xlu0 %587, %v36
  %v589 = vpop.permute.xlu0 %588
  %591 = vset.pattern.permute.xlu0 3
  %592 = vperm.xlu0 %591, %v37
  %v593 = vpop.permute.xlu0 %592
  %595 = vset.pattern.permute.xlu0 3
  %596 = vperm.xlu0 %595, %v38
  %v597 = vpop.permute.xlu0 %596
  %599 = vset.pattern.permute.xlu0 3
  %600 = vperm.xlu0 %599, %v39
  %v601 = vpop.permute.xlu0 %600
  %603 = vset.pattern.permute.xlu0 3
  %604 = vperm.xlu0 %603, %v40
  %v605 = vpop.permute.xlu0 %604
  %607 = vset.pattern.permute.xlu0 3
  %608 = vperm.xlu0 %607, %v41
  %v609 = vpop.permute.xlu0 %608
  %611 = vset.pattern.permute.xlu0 3
  %612 = vperm.xlu0 %611, %v42
  %v613 = vpop.permute.xlu0 %612
  %615 = vset.pattern.permute.xlu0 3
  %616 = vperm.xlu0 %615, %v43
  %v617 = vpop.permute.xlu0 %616
  %619 = vset.pattern.permute.xlu0 3
  %620 = vperm.xlu0 %619, %v44
  %v621 = vpop.permute.xlu0 %620
  %623 = vset.pattern.permute.xlu0 3
  %624 = vperm.xlu0 %623, %v45
  %v625 = vpop.permute.xlu0 %624
  %627 = vset.pattern.permute.xlu0 3
  %628 = vperm.xlu0 %627, %v46
  %v629 = vpop.permute.xlu0 %628
  %631 = vset.pattern.permute.xlu0 3
  %632 = vperm.xlu0 %631, %v47
  %v633 = vpop.permute.xlu0 %632
  %635 = vset.pattern.permute.xlu0 3
  %636 = vperm.xlu0 %635, %v48
  %v637 = vpop.permute.xlu0 %636
  %639 = vset.pattern.permute.xlu0 3
  %640 = vperm.xlu0 %639, %v49
  %v641 = vpop.permute.xlu0 %640
  %643 = vset.pattern.permute.xlu0 3
  %644 = vperm.xlu0 %643, %v50
  %v645 = vpop.permute.xlu0 %644
  %647 = vset.pattern.permute.xlu0 3
  %648 = vperm.xlu0 %647, %v51
  %v649 = vpop.permute.xlu0 %648
  %651 = vset.pattern.permute.xlu0 3
  %652 = vperm.xlu0 %651, %v52
  %v653 = vpop.permute.xlu0 %652
  %655 = vset.pattern.permute.xlu0 3
  %656 = vperm.xlu0 %655, %v53
  %v657 = vpop.permute.xlu0 %656
  %659 = vset.pattern.permute.xlu0 3
  %660 = vperm.xlu0 %659, %v54
  %v661 = vpop.permute.xlu0 %660
  %663 = vset.pattern.permute.xlu0 3
  %664 = vperm.xlu0 %663, %v55
  %v665 = vpop.permute.xlu0 %664
  %667 = vset.pattern.permute.xlu0 3
  %668 = vperm.xlu0 %667, %v56
  %v669 = vpop.permute.xlu0 %668
  %671 = vset.pattern.permute.xlu0 3
  %672 = vperm.xlu0 %671, %v57
  %v673 = vpop.permute.xlu0 %672
  %675 = vset.pattern.permute.xlu0 3
  %676 = vperm.xlu0 %675, %v58
  %v677 = vpop.permute.xlu0 %676
  %679 = vset.pattern.permute.xlu0 3
  %680 = vperm.xlu0 %679, %v59
  %v681 = vpop.permute.xlu0 %680
  %683 = vset.pattern.permute.xlu0 3
  %684 = vperm.xlu0 %683, %v60
  %v685 = vpop.permute.xlu0 %684
  %687 = vset.pattern.permute.xlu0 3
  %688 = vperm.xlu0 %687, %v61
  %v689 = vpop.permute.xlu0 %688
  %691 = vset.pattern.permute.xlu0 3
  %692 = vperm.xlu0 %691, %v62
  %v693 = vpop.permute.xlu0 %692
  %695 = vset.pattern.permute.xlu0 3
  %696 = vperm.xlu0 %695, %v63
  %v697 = vpop.permute.xlu0 %696
  %699 = vset.pattern.permute.xlu0 3
  %700 = vperm.xlu0 %699, %v64
  %v701 = vpop.permute.xlu0 %700
  %703 = vset.pattern.permute.xlu0 3
  %704 = vperm.xlu0 %703, %v65
  %v705 = vpop.permute.xlu0 %704
  %707 = vset.pattern.permute.xlu0 3
  %708 = vperm.xlu0 %707, %v66
  %v709 = vpop.permute.xlu0 %708
  %711 = vset.pattern.permute.xlu0 3
  %712 = vperm.xlu0 %711, %v67
  %v713 = vpop.permute.xlu0 %712
  %715 = vset.pattern.permute.xlu0 3
  %716 = vperm.xlu0 %715, %v68
  %v717 = vpop.permute.xlu0 %716
  %719 = vset.pattern.permute.xlu0 3
  %720 = vperm.xlu0 %719, %v69
  %v721 = vpop.permute.xlu0 %720
  %723 = vset.pattern.permute.xlu0 3
  %724 = vperm.xlu0 %723, %v70
  %v725 = vpop.permute.xlu0 %724
  %727 = vset.pattern.permute.xlu0 3
  %728 = vperm.xlu0 %727, %v71
  %v729 = vpop.permute.xlu0 %728
  %731 = vset.pattern.permute.xlu0 3
  %732 = vperm.xlu0 %731, %v72
  %v733 = vpop.permute.xlu0 %732
  %735 = vset.pattern.permute.xlu0 3
  %736 = vperm.xlu0 %735, %v73
  %v737 = vpop.permute.xlu0 %736
  %739 = vset.pattern.permute.xlu0 3
  %740 = vperm.xlu0 %739, %v74
  %v741 = vpop.permute.xlu0 %740
  %743 = vset.pattern.permute.xlu0 3
  %744 = vperm.xlu0 %743, %v75
  %v745 = vpop.permute.xlu0 %744
  %747 = vset.pattern.permute.xlu0 3
  %748 = vperm.xlu0 %747, %v76
  %v749 = vpop.permute.xlu0 %748
  %751 = vset.pattern.permute.xlu0 3
  %752 = vperm.xlu0 %751, %v77
  %v753 = vpop.permute.xlu0 %752
  %755 = vset.pattern.permute.xlu0 3
  %756 = vperm.xlu0 %755, %v78
  %v757 = vpop.permute.xlu0 %756
  %759 = vset.pattern.permute.xlu0 3
  %760 = vperm.xlu0 %759, %v79
  %v761 = vpop.permute.xlu0 %760
  %763 = vset.pattern.permute.xlu0 3
  %764 = vperm.xlu0 %763, %v80
  %v765 = vpop.permute.xlu0 %764
  %767 = vset.pattern.permute.xlu0 3
  %768 = vperm.xlu0 %767, %v81
  %v769 = vpop.permute.xlu0 %768
  %771 = vset.pattern.permute.xlu0 3
  %772 = vperm.xlu0 %771, %v82
  %v773 = vpop.permute.xlu0 %772
  %v775 = vadd.f32 %v521, %v455
  %v776 = vadd.f32 %v525, %v456
  %v777 = vadd.f32 %v529, %v457
  %v778 = vadd.f32 %v533, %v458
  %v779 = vadd.f32 %v537, %v459
  %v780 = vadd.f32 %v541, %v460
  %v781 = vadd.f32 %v545, %v461
  %v782 = vadd.f32 %v549, %v462
  %v783 = vadd.f32 %v553, %v463
  %v784 = vadd.f32 %v557, %v464
  %v785 = vadd.f32 %v561, %v465
  %v786 = vadd.f32 %v565, %v466
  %v787 = vadd.f32 %v569, %v467
  %v788 = vadd.f32 %v573, %v468
  %v789 = vadd.f32 %v577, %v469
  %v790 = vadd.f32 %v581, %v470
  %v791 = vadd.f32 %v585, %v471
  %v792 = vadd.f32 %v589, %v472
  %v793 = vadd.f32 %v593, %v473
  %v794 = vadd.f32 %v597, %v474
  %v795 = vadd.f32 %v601, %v475
  %v796 = vadd.f32 %v605, %v476
  %v797 = vadd.f32 %v609, %v477
  %v798 = vadd.f32 %v613, %v478
  %v799 = vadd.f32 %v617, %v479
  %v800 = vadd.f32 %v621, %v480
  %v801 = vadd.f32 %v625, %v481
  %v802 = vadd.f32 %v629, %v482
  %v803 = vadd.f32 %v633, %v483
  %v804 = vadd.f32 %v637, %v484
  %v805 = vadd.f32 %v641, %v485
  %v806 = vadd.f32 %v645, %v486
  %v807 = vadd.f32 %v649, %v487
  %v808 = vadd.f32 %v653, %v488
  %v809 = vadd.f32 %v657, %v489
  %v810 = vadd.f32 %v661, %v490
  %v811 = vadd.f32 %v665, %v491
  %v812 = vadd.f32 %v669, %v492
  %v813 = vadd.f32 %v673, %v493
  %v814 = vadd.f32 %v677, %v494
  %v815 = vadd.f32 %v681, %v495
  %v816 = vadd.f32 %v685, %v496
  %v817 = vadd.f32 %v689, %v497
  %v818 = vadd.f32 %v693, %v498
  %v819 = vadd.f32 %v697, %v499
  %v820 = vadd.f32 %v701, %v500
  %v821 = vadd.f32 %v705, %v501
  %v822 = vadd.f32 %v709, %v502
  %v823 = vadd.f32 %v713, %v503
  %v824 = vadd.f32 %v717, %v504
  %v825 = vadd.f32 %v721, %v505
  %v826 = vadd.f32 %v725, %v506
  %v827 = vadd.f32 %v729, %v507
  %v828 = vadd.f32 %v733, %v508
  %v829 = vadd.f32 %v737, %v509
  %v830 = vadd.f32 %v741, %v510
  %v831 = vadd.f32 %v745, %v511
  %v832 = vadd.f32 %v749, %v512
  %v833 = vadd.f32 %v753, %v513
  %v834 = vadd.f32 %v757, %v514
  %v835 = vadd.f32 %v761, %v515
  %v836 = vadd.f32 %v765, %v516
  %v837 = vadd.f32 %v769, %v517
  %v838 = vadd.f32 %v773, %v518
  %839 = vset.pattern.permute.xlu0 1
  %840 = vperm.xlu0 %839, %v19
  %v841 = vpop.permute.xlu0 %840
  %843 = vset.pattern.permute.xlu0 1
  %844 = vperm.xlu0 %843, %v20
  %v845 = vpop.permute.xlu0 %844
  %847 = vset.pattern.permute.xlu0 1
  %848 = vperm.xlu0 %847, %v21
  %v849 = vpop.permute.xlu0 %848
  %851 = vset.pattern.permute.xlu0 1
  %852 = vperm.xlu0 %851, %v22
  %v853 = vpop.permute.xlu0 %852
  %855 = vset.pattern.permute.xlu0 1
  %856 = vperm.xlu0 %855, %v23
  %v857 = vpop.permute.xlu0 %856
  %859 = vset.pattern.permute.xlu0 1
  %860 = vperm.xlu0 %859, %v24
  %v861 = vpop.permute.xlu0 %860
  %863 = vset.pattern.permute.xlu0 1
  %864 = vperm.xlu0 %863, %v25
  %v865 = vpop.permute.xlu0 %864
  %867 = vset.pattern.permute.xlu0 1
  %868 = vperm.xlu0 %867, %v26
  %v869 = vpop.permute.xlu0 %868
  %871 = vset.pattern.permute.xlu0 1
  %872 = vperm.xlu0 %871, %v27
  %v873 = vpop.permute.xlu0 %872
  %875 = vset.pattern.permute.xlu0 1
  %876 = vperm.xlu0 %875, %v28
  %v877 = vpop.permute.xlu0 %876
  %879 = vset.pattern.permute.xlu0 1
  %880 = vperm.xlu0 %879, %v29
  %v881 = vpop.permute.xlu0 %880
  %883 = vset.pattern.permute.xlu0 1
  %884 = vperm.xlu0 %883, %v30
  %v885 = vpop.permute.xlu0 %884
  %887 = vset.pattern.permute.xlu0 1
  %888 = vperm.xlu0 %887, %v31
  %v889 = vpop.permute.xlu0 %888
  %891 = vset.pattern.permute.xlu0 1
  %892 = vperm.xlu0 %891, %v32
  %v893 = vpop.permute.xlu0 %892
  %895 = vset.pattern.permute.xlu0 1
  %896 = vperm.xlu0 %895, %v33
  %v897 = vpop.permute.xlu0 %896
  %899 = vset.pattern.permute.xlu0 1
  %900 = vperm.xlu0 %899, %v34
  %v901 = vpop.permute.xlu0 %900
  %903 = vset.pattern.permute.xlu0 1
  %904 = vperm.xlu0 %903, %v35
  %v905 = vpop.permute.xlu0 %904
  %907 = vset.pattern.permute.xlu0 1
  %908 = vperm.xlu0 %907, %v36
  %v909 = vpop.permute.xlu0 %908
  %911 = vset.pattern.permute.xlu0 1
  %912 = vperm.xlu0 %911, %v37
  %v913 = vpop.permute.xlu0 %912
  %915 = vset.pattern.permute.xlu0 1
  %916 = vperm.xlu0 %915, %v38
  %v917 = vpop.permute.xlu0 %916
  %919 = vset.pattern.permute.xlu0 1
  %920 = vperm.xlu0 %919, %v39
  %v921 = vpop.permute.xlu0 %920
  %923 = vset.pattern.permute.xlu0 1
  %924 = vperm.xlu0 %923, %v40
  %v925 = vpop.permute.xlu0 %924
  %927 = vset.pattern.permute.xlu0 1
  %928 = vperm.xlu0 %927, %v41
  %v929 = vpop.permute.xlu0 %928
  %931 = vset.pattern.permute.xlu0 1
  %932 = vperm.xlu0 %931, %v42
  %v933 = vpop.permute.xlu0 %932
  %935 = vset.pattern.permute.xlu0 1
  %936 = vperm.xlu0 %935, %v43
  %v937 = vpop.permute.xlu0 %936
  %939 = vset.pattern.permute.xlu0 1
  %940 = vperm.xlu0 %939, %v44
  %v941 = vpop.permute.xlu0 %940
  %943 = vset.pattern.permute.xlu0 1
  %944 = vperm.xlu0 %943, %v45
  %v945 = vpop.permute.xlu0 %944
  %947 = vset.pattern.permute.xlu0 1
  %948 = vperm.xlu0 %947, %v46
  %v949 = vpop.permute.xlu0 %948
  %951 = vset.pattern.permute.xlu0 1
  %952 = vperm.xlu0 %951, %v47
  %v953 = vpop.permute.xlu0 %952
  %955 = vset.pattern.permute.xlu0 1
  %956 = vperm.xlu0 %955, %v48
  %v957 = vpop.permute.xlu0 %956
  %959 = vset.pattern.permute.xlu0 1
  %960 = vperm.xlu0 %959, %v49
  %v961 = vpop.permute.xlu0 %960
  %963 = vset.pattern.permute.xlu0 1
  %964 = vperm.xlu0 %963, %v50
  %v965 = vpop.permute.xlu0 %964
  %967 = vset.pattern.permute.xlu0 1
  %968 = vperm.xlu0 %967, %v51
  %v969 = vpop.permute.xlu0 %968
  %971 = vset.pattern.permute.xlu0 1
  %972 = vperm.xlu0 %971, %v52
  %v973 = vpop.permute.xlu0 %972
  %975 = vset.pattern.permute.xlu0 1
  %976 = vperm.xlu0 %975, %v53
  %v977 = vpop.permute.xlu0 %976
  %979 = vset.pattern.permute.xlu0 1
  %980 = vperm.xlu0 %979, %v54
  %v981 = vpop.permute.xlu0 %980
  %983 = vset.pattern.permute.xlu0 1
  %984 = vperm.xlu0 %983, %v55
  %v985 = vpop.permute.xlu0 %984
  %987 = vset.pattern.permute.xlu0 1
  %988 = vperm.xlu0 %987, %v56
  %v989 = vpop.permute.xlu0 %988
  %991 = vset.pattern.permute.xlu0 1
  %992 = vperm.xlu0 %991, %v57
  %v993 = vpop.permute.xlu0 %992
  %995 = vset.pattern.permute.xlu0 1
  %996 = vperm.xlu0 %995, %v58
  %v997 = vpop.permute.xlu0 %996
  %999 = vset.pattern.permute.xlu0 1
  %1000 = vperm.xlu0 %999, %v59
  %v1001 = vpop.permute.xlu0 %1000
  %1003 = vset.pattern.permute.xlu0 1
  %1004 = vperm.xlu0 %1003, %v60
  %v1005 = vpop.permute.xlu0 %1004
  %1007 = vset.pattern.permute.xlu0 1
  %1008 = vperm.xlu0 %1007, %v61
  %v1009 = vpop.permute.xlu0 %1008
  %1011 = vset.pattern.permute.xlu0 1
  %1012 = vperm.xlu0 %1011, %v62
  %v1013 = vpop.permute.xlu0 %1012
  %1015 = vset.pattern.permute.xlu0 1
  %1016 = vperm.xlu0 %1015, %v63
  %v1017 = vpop.permute.xlu0 %1016
  %1019 = vset.pattern.permute.xlu0 1
  %1020 = vperm.xlu0 %1019, %v64
  %v1021 = vpop.permute.xlu0 %1020
  %1023 = vset.pattern.permute.xlu0 1
  %1024 = vperm.xlu0 %1023, %v65
  %v1025 = vpop.permute.xlu0 %1024
  %1027 = vset.pattern.permute.xlu0 1
  %1028 = vperm.xlu0 %1027, %v66
  %v1029 = vpop.permute.xlu0 %1028
  %1031 = vset.pattern.permute.xlu0 1
  %1032 = vperm.xlu0 %1031, %v67
  %v1033 = vpop.permute.xlu0 %1032
  %1035 = vset.pattern.permute.xlu0 1
  %1036 = vperm.xlu0 %1035, %v68
  %v1037 = vpop.permute.xlu0 %1036
  %1039 = vset.pattern.permute.xlu0 1
  %1040 = vperm.xlu0 %1039, %v69
  %v1041 = vpop.permute.xlu0 %1040
  %1043 = vset.pattern.permute.xlu0 1
  %1044 = vperm.xlu0 %1043, %v70
  %v1045 = vpop.permute.xlu0 %1044
  %1047 = vset.pattern.permute.xlu0 1
  %1048 = vperm.xlu0 %1047, %v71
  %v1049 = vpop.permute.xlu0 %1048
  %1051 = vset.pattern.permute.xlu0 1
  %1052 = vperm.xlu0 %1051, %v72
  %v1053 = vpop.permute.xlu0 %1052
  %1055 = vset.pattern.permute.xlu0 1
  %1056 = vperm.xlu0 %1055, %v73
  %v1057 = vpop.permute.xlu0 %1056
  %1059 = vset.pattern.permute.xlu0 1
  %1060 = vperm.xlu0 %1059, %v74
  %v1061 = vpop.permute.xlu0 %1060
  %1063 = vset.pattern.permute.xlu0 1
  %1064 = vperm.xlu0 %1063, %v75
  %v1065 = vpop.permute.xlu0 %1064
  %1067 = vset.pattern.permute.xlu0 1
  %1068 = vperm.xlu0 %1067, %v76
  %v1069 = vpop.permute.xlu0 %1068
  %1071 = vset.pattern.permute.xlu0 1
  %1072 = vperm.xlu0 %1071, %v77
  %v1073 = vpop.permute.xlu0 %1072
  %1075 = vset.pattern.permute.xlu0 1
  %1076 = vperm.xlu0 %1075, %v78
  %v1077 = vpop.permute.xlu0 %1076
  %1079 = vset.pattern.permute.xlu0 1
  %1080 = vperm.xlu0 %1079, %v79
  %v1081 = vpop.permute.xlu0 %1080
  %1083 = vset.pattern.permute.xlu0 1
  %1084 = vperm.xlu0 %1083, %v80
  %v1085 = vpop.permute.xlu0 %1084
  %1087 = vset.pattern.permute.xlu0 1
  %1088 = vperm.xlu0 %1087, %v81
  %v1089 = vpop.permute.xlu0 %1088
  %1091 = vset.pattern.permute.xlu0 1
  %1092 = vperm.xlu0 %1091, %v82
  %v1093 = vpop.permute.xlu0 %1092
  %v1095 = vlaneseq
  %v1096 = vshrl.u32 %v1095, 7
  %v1097 = vsub.s32 1, %v1096
  %v1098 = vrot.slane %v18, %v1097
  %v1099 = vmul.f32 %v841, %v1098
  %v1100 = vmul.f32 %v845, %v1098
  %v1101 = vmul.f32 %v849, %v1098
  %v1102 = vmul.f32 %v853, %v1098
  %v1103 = vmul.f32 %v857, %v1098
  %v1104 = vmul.f32 %v861, %v1098
  %v1105 = vmul.f32 %v865, %v1098
  %v1106 = vmul.f32 %v869, %v1098
  %v1107 = vmul.f32 %v873, %v1098
  %v1108 = vmul.f32 %v877, %v1098
  %v1109 = vmul.f32 %v881, %v1098
  %v1110 = vmul.f32 %v885, %v1098
  %v1111 = vmul.f32 %v889, %v1098
  %v1112 = vmul.f32 %v893, %v1098
  %v1113 = vmul.f32 %v897, %v1098
  %v1114 = vmul.f32 %v901, %v1098
  %v1115 = vmul.f32 %v905, %v1098
  %v1116 = vmul.f32 %v909, %v1098
  %v1117 = vmul.f32 %v913, %v1098
  %v1118 = vmul.f32 %v917, %v1098
  %v1119 = vmul.f32 %v921, %v1098
  %v1120 = vmul.f32 %v925, %v1098
  %v1121 = vmul.f32 %v929, %v1098
  %v1122 = vmul.f32 %v933, %v1098
  %v1123 = vmul.f32 %v937, %v1098
  %v1124 = vmul.f32 %v941, %v1098
  %v1125 = vmul.f32 %v945, %v1098
  %v1126 = vmul.f32 %v949, %v1098
  %v1127 = vmul.f32 %v953, %v1098
  %v1128 = vmul.f32 %v957, %v1098
  %v1129 = vmul.f32 %v961, %v1098
  %v1130 = vmul.f32 %v965, %v1098
  %v1131 = vmul.f32 %v969, %v1098
  %v1132 = vmul.f32 %v973, %v1098
  %v1133 = vmul.f32 %v977, %v1098
  %v1134 = vmul.f32 %v981, %v1098
  %v1135 = vmul.f32 %v985, %v1098
  %v1136 = vmul.f32 %v989, %v1098
  %v1137 = vmul.f32 %v993, %v1098
  %v1138 = vmul.f32 %v997, %v1098
  %v1139 = vmul.f32 %v1001, %v1098
  %v1140 = vmul.f32 %v1005, %v1098
  %v1141 = vmul.f32 %v1009, %v1098
  %v1142 = vmul.f32 %v1013, %v1098
  %v1143 = vmul.f32 %v1017, %v1098
  %v1144 = vmul.f32 %v1021, %v1098
  %v1145 = vmul.f32 %v1025, %v1098
  %v1146 = vmul.f32 %v1029, %v1098
  %v1147 = vmul.f32 %v1033, %v1098
  %v1148 = vmul.f32 %v1037, %v1098
  %v1149 = vmul.f32 %v1041, %v1098
  %v1150 = vmul.f32 %v1045, %v1098
  %v1151 = vmul.f32 %v1049, %v1098
  %v1152 = vmul.f32 %v1053, %v1098
  %v1153 = vmul.f32 %v1057, %v1098
  %v1154 = vmul.f32 %v1061, %v1098
  %v1155 = vmul.f32 %v1065, %v1098
  %v1156 = vmul.f32 %v1069, %v1098
  %v1157 = vmul.f32 %v1073, %v1098
  %v1158 = vmul.f32 %v1077, %v1098
  %v1159 = vmul.f32 %v1081, %v1098
  %v1160 = vmul.f32 %v1085, %v1098
  %v1161 = vmul.f32 %v1089, %v1098
  %v1162 = vmul.f32 %v1093, %v1098
  %v1163 = vadd.f32 %v775, %v1099
  %v1164 = vadd.f32 %v776, %v1100
  %v1165 = vadd.f32 %v777, %v1101
  %v1166 = vadd.f32 %v778, %v1102
  %v1167 = vadd.f32 %v779, %v1103
  %v1168 = vadd.f32 %v780, %v1104
  %v1169 = vadd.f32 %v781, %v1105
  %v1170 = vadd.f32 %v782, %v1106
  %v1171 = vadd.f32 %v783, %v1107
  %v1172 = vadd.f32 %v784, %v1108
  %v1173 = vadd.f32 %v785, %v1109
  %v1174 = vadd.f32 %v786, %v1110
  %v1175 = vadd.f32 %v787, %v1111
  %v1176 = vadd.f32 %v788, %v1112
  %v1177 = vadd.f32 %v789, %v1113
  %v1178 = vadd.f32 %v790, %v1114
  %v1179 = vadd.f32 %v791, %v1115
  %v1180 = vadd.f32 %v792, %v1116
  %v1181 = vadd.f32 %v793, %v1117
  %v1182 = vadd.f32 %v794, %v1118
  %v1183 = vadd.f32 %v795, %v1119
  %v1184 = vadd.f32 %v796, %v1120
  %v1185 = vadd.f32 %v797, %v1121
  %v1186 = vadd.f32 %v798, %v1122
  %v1187 = vadd.f32 %v799, %v1123
  %v1188 = vadd.f32 %v800, %v1124
  %v1189 = vadd.f32 %v801, %v1125
  %v1190 = vadd.f32 %v802, %v1126
  %v1191 = vadd.f32 %v803, %v1127
  %v1192 = vadd.f32 %v804, %v1128
  %v1193 = vadd.f32 %v805, %v1129
  %v1194 = vadd.f32 %v806, %v1130
  %v1195 = vadd.f32 %v807, %v1131
  %v1196 = vadd.f32 %v808, %v1132
  %v1197 = vadd.f32 %v809, %v1133
  %v1198 = vadd.f32 %v810, %v1134
  %v1199 = vadd.f32 %v811, %v1135
  %v1200 = vadd.f32 %v812, %v1136
  %v1201 = vadd.f32 %v813, %v1137
  %v1202 = vadd.f32 %v814, %v1138
  %v1203 = vadd.f32 %v815, %v1139
  %v1204 = vadd.f32 %v816, %v1140
  %v1205 = vadd.f32 %v817, %v1141
  %v1206 = vadd.f32 %v818, %v1142
  %v1207 = vadd.f32 %v819, %v1143
  %v1208 = vadd.f32 %v820, %v1144
  %v1209 = vadd.f32 %v821, %v1145
  %v1210 = vadd.f32 %v822, %v1146
  %v1211 = vadd.f32 %v823, %v1147
  %v1212 = vadd.f32 %v824, %v1148
  %v1213 = vadd.f32 %v825, %v1149
  %v1214 = vadd.f32 %v826, %v1150
  %v1215 = vadd.f32 %v827, %v1151
  %v1216 = vadd.f32 %v828, %v1152
  %v1217 = vadd.f32 %v829, %v1153
  %v1218 = vadd.f32 %v830, %v1154
  %v1219 = vadd.f32 %v831, %v1155
  %v1220 = vadd.f32 %v832, %v1156
  %v1221 = vadd.f32 %v833, %v1157
  %v1222 = vadd.f32 %v834, %v1158
  %v1223 = vadd.f32 %v835, %v1159
  %v1224 = vadd.f32 %v836, %v1160
  %v1225 = vadd.f32 %v837, %v1161
  %v1226 = vadd.f32 %v838, %v1162
  %1227 = vset.pattern.permute.xlu0 2
  %1228 = vperm.xlu0 %1227, %v19
  %v1229 = vpop.permute.xlu0 %1228
  %1231 = vset.pattern.permute.xlu0 2
  %1232 = vperm.xlu0 %1231, %v20
  %v1233 = vpop.permute.xlu0 %1232
  %1235 = vset.pattern.permute.xlu0 2
  %1236 = vperm.xlu0 %1235, %v21
  %v1237 = vpop.permute.xlu0 %1236
  %1239 = vset.pattern.permute.xlu0 2
  %1240 = vperm.xlu0 %1239, %v22
  %v1241 = vpop.permute.xlu0 %1240
  %1243 = vset.pattern.permute.xlu0 2
  %1244 = vperm.xlu0 %1243, %v23
  %v1245 = vpop.permute.xlu0 %1244
  %1247 = vset.pattern.permute.xlu0 2
  %1248 = vperm.xlu0 %1247, %v24
  %v1249 = vpop.permute.xlu0 %1248
  %1251 = vset.pattern.permute.xlu0 2
  %1252 = vperm.xlu0 %1251, %v25
  %v1253 = vpop.permute.xlu0 %1252
  %1255 = vset.pattern.permute.xlu0 2
  %1256 = vperm.xlu0 %1255, %v26
  %v1257 = vpop.permute.xlu0 %1256
  %1259 = vset.pattern.permute.xlu0 2
  %1260 = vperm.xlu0 %1259, %v27
  %v1261 = vpop.permute.xlu0 %1260
  %1263 = vset.pattern.permute.xlu0 2
  %1264 = vperm.xlu0 %1263, %v28
  %v1265 = vpop.permute.xlu0 %1264
  %1267 = vset.pattern.permute.xlu0 2
  %1268 = vperm.xlu0 %1267, %v29
  %v1269 = vpop.permute.xlu0 %1268
  %1271 = vset.pattern.permute.xlu0 2
  %1272 = vperm.xlu0 %1271, %v30
  %v1273 = vpop.permute.xlu0 %1272
  %1275 = vset.pattern.permute.xlu0 2
  %1276 = vperm.xlu0 %1275, %v31
  %v1277 = vpop.permute.xlu0 %1276
  %1279 = vset.pattern.permute.xlu0 2
  %1280 = vperm.xlu0 %1279, %v32
  %v1281 = vpop.permute.xlu0 %1280
  %1283 = vset.pattern.permute.xlu0 2
  %1284 = vperm.xlu0 %1283, %v33
  %v1285 = vpop.permute.xlu0 %1284
  %1287 = vset.pattern.permute.xlu0 2
  %1288 = vperm.xlu0 %1287, %v34
  %v1289 = vpop.permute.xlu0 %1288
  %1291 = vset.pattern.permute.xlu0 2
  %1292 = vperm.xlu0 %1291, %v35
  %v1293 = vpop.permute.xlu0 %1292
  %1295 = vset.pattern.permute.xlu0 2
  %1296 = vperm.xlu0 %1295, %v36
  %v1297 = vpop.permute.xlu0 %1296
  %1299 = vset.pattern.permute.xlu0 2
  %1300 = vperm.xlu0 %1299, %v37
  %v1301 = vpop.permute.xlu0 %1300
  %1303 = vset.pattern.permute.xlu0 2
  %1304 = vperm.xlu0 %1303, %v38
  %v1305 = vpop.permute.xlu0 %1304
  %1307 = vset.pattern.permute.xlu0 2
  %1308 = vperm.xlu0 %1307, %v39
  %v1309 = vpop.permute.xlu0 %1308
  %1311 = vset.pattern.permute.xlu0 2
  %1312 = vperm.xlu0 %1311, %v40
  %v1313 = vpop.permute.xlu0 %1312
  %1315 = vset.pattern.permute.xlu0 2
  %1316 = vperm.xlu0 %1315, %v41
  %v1317 = vpop.permute.xlu0 %1316
  %1319 = vset.pattern.permute.xlu0 2
  %1320 = vperm.xlu0 %1319, %v42
  %v1321 = vpop.permute.xlu0 %1320
  %1323 = vset.pattern.permute.xlu0 2
  %1324 = vperm.xlu0 %1323, %v43
  %v1325 = vpop.permute.xlu0 %1324
  %1327 = vset.pattern.permute.xlu0 2
  %1328 = vperm.xlu0 %1327, %v44
  %v1329 = vpop.permute.xlu0 %1328
  %1331 = vset.pattern.permute.xlu0 2
  %1332 = vperm.xlu0 %1331, %v45
  %v1333 = vpop.permute.xlu0 %1332
  %1335 = vset.pattern.permute.xlu0 2
  %1336 = vperm.xlu0 %1335, %v46
  %v1337 = vpop.permute.xlu0 %1336
  %1339 = vset.pattern.permute.xlu0 2
  %1340 = vperm.xlu0 %1339, %v47
  %v1341 = vpop.permute.xlu0 %1340
  %1343 = vset.pattern.permute.xlu0 2
  %1344 = vperm.xlu0 %1343, %v48
  %v1345 = vpop.permute.xlu0 %1344
  %1347 = vset.pattern.permute.xlu0 2
  %1348 = vperm.xlu0 %1347, %v49
  %v1349 = vpop.permute.xlu0 %1348
  %1351 = vset.pattern.permute.xlu0 2
  %1352 = vperm.xlu0 %1351, %v50
  %v1353 = vpop.permute.xlu0 %1352
  %1355 = vset.pattern.permute.xlu0 2
  %1356 = vperm.xlu0 %1355, %v51
  %v1357 = vpop.permute.xlu0 %1356
  %1359 = vset.pattern.permute.xlu0 2
  %1360 = vperm.xlu0 %1359, %v52
  %v1361 = vpop.permute.xlu0 %1360
  %1363 = vset.pattern.permute.xlu0 2
  %1364 = vperm.xlu0 %1363, %v53
  %v1365 = vpop.permute.xlu0 %1364
  %1367 = vset.pattern.permute.xlu0 2
  %1368 = vperm.xlu0 %1367, %v54
  %v1369 = vpop.permute.xlu0 %1368
  %1371 = vset.pattern.permute.xlu0 2
  %1372 = vperm.xlu0 %1371, %v55
  %v1373 = vpop.permute.xlu0 %1372
  %1375 = vset.pattern.permute.xlu0 2
  %1376 = vperm.xlu0 %1375, %v56
  %v1377 = vpop.permute.xlu0 %1376
  %1379 = vset.pattern.permute.xlu0 2
  %1380 = vperm.xlu0 %1379, %v57
  %v1381 = vpop.permute.xlu0 %1380
  %1383 = vset.pattern.permute.xlu0 2
  %1384 = vperm.xlu0 %1383, %v58
  %v1385 = vpop.permute.xlu0 %1384
  %1387 = vset.pattern.permute.xlu0 2
  %1388 = vperm.xlu0 %1387, %v59
  %v1389 = vpop.permute.xlu0 %1388
  %1391 = vset.pattern.permute.xlu0 2
  %1392 = vperm.xlu0 %1391, %v60
  %v1393 = vpop.permute.xlu0 %1392
  %1395 = vset.pattern.permute.xlu0 2
  %1396 = vperm.xlu0 %1395, %v61
  %v1397 = vpop.permute.xlu0 %1396
  %1399 = vset.pattern.permute.xlu0 2
  %1400 = vperm.xlu0 %1399, %v62
  %v1401 = vpop.permute.xlu0 %1400
  %1403 = vset.pattern.permute.xlu0 2
  %1404 = vperm.xlu0 %1403, %v63
  %v1405 = vpop.permute.xlu0 %1404
  %1407 = vset.pattern.permute.xlu0 2
  %1408 = vperm.xlu0 %1407, %v64
  %v1409 = vpop.permute.xlu0 %1408
  %1411 = vset.pattern.permute.xlu0 2
  %1412 = vperm.xlu0 %1411, %v65
  %v1413 = vpop.permute.xlu0 %1412
  %1415 = vset.pattern.permute.xlu0 2
  %1416 = vperm.xlu0 %1415, %v66
  %v1417 = vpop.permute.xlu0 %1416
  %1419 = vset.pattern.permute.xlu0 2
  %1420 = vperm.xlu0 %1419, %v67
  %v1421 = vpop.permute.xlu0 %1420
  %1423 = vset.pattern.permute.xlu0 2
  %1424 = vperm.xlu0 %1423, %v68
  %v1425 = vpop.permute.xlu0 %1424
  %1427 = vset.pattern.permute.xlu0 2
  %1428 = vperm.xlu0 %1427, %v69
  %v1429 = vpop.permute.xlu0 %1428
  %1431 = vset.pattern.permute.xlu0 2
  %1432 = vperm.xlu0 %1431, %v70
  %v1433 = vpop.permute.xlu0 %1432
  %1435 = vset.pattern.permute.xlu0 2
  %1436 = vperm.xlu0 %1435, %v71
  %v1437 = vpop.permute.xlu0 %1436
  %1439 = vset.pattern.permute.xlu0 2
  %1440 = vperm.xlu0 %1439, %v72
  %v1441 = vpop.permute.xlu0 %1440
  %1443 = vset.pattern.permute.xlu0 2
  %1444 = vperm.xlu0 %1443, %v73
  %v1445 = vpop.permute.xlu0 %1444
  %1447 = vset.pattern.permute.xlu0 2
  %1448 = vperm.xlu0 %1447, %v74
  %v1449 = vpop.permute.xlu0 %1448
  %1451 = vset.pattern.permute.xlu0 2
  %1452 = vperm.xlu0 %1451, %v75
  %v1453 = vpop.permute.xlu0 %1452
  %1455 = vset.pattern.permute.xlu0 2
  %1456 = vperm.xlu0 %1455, %v76
  %v1457 = vpop.permute.xlu0 %1456
  %1459 = vset.pattern.permute.xlu0 2
  %1460 = vperm.xlu0 %1459, %v77
  %v1461 = vpop.permute.xlu0 %1460
  %1463 = vset.pattern.permute.xlu0 2
  %1464 = vperm.xlu0 %1463, %v78
  %v1465 = vpop.permute.xlu0 %1464
  %1467 = vset.pattern.permute.xlu0 2
  %1468 = vperm.xlu0 %1467, %v79
  %v1469 = vpop.permute.xlu0 %1468
  %1471 = vset.pattern.permute.xlu0 2
  %1472 = vperm.xlu0 %1471, %v80
  %v1473 = vpop.permute.xlu0 %1472
  %1475 = vset.pattern.permute.xlu0 2
  %1476 = vperm.xlu0 %1475, %v81
  %v1477 = vpop.permute.xlu0 %1476
  %1479 = vset.pattern.permute.xlu0 2
  %1480 = vperm.xlu0 %1479, %v82
  %v1481 = vpop.permute.xlu0 %1480
  %v1483 = vlaneseq
  %v1484 = vshrl.u32 %v1483, 7
  %v1485 = vsub.s32 2, %v1484
  %v1486 = vrot.slane %v18, %v1485
  %v1487 = vmul.f32 %v1229, %v1486
  %v1488 = vmul.f32 %v1233, %v1486
  %v1489 = vmul.f32 %v1237, %v1486
  %v1490 = vmul.f32 %v1241, %v1486
  %v1491 = vmul.f32 %v1245, %v1486
  %v1492 = vmul.f32 %v1249, %v1486
  %v1493 = vmul.f32 %v1253, %v1486
  %v1494 = vmul.f32 %v1257, %v1486
  %v1495 = vmul.f32 %v1261, %v1486
  %v1496 = vmul.f32 %v1265, %v1486
  %v1497 = vmul.f32 %v1269, %v1486
  %v1498 = vmul.f32 %v1273, %v1486
  %v1499 = vmul.f32 %v1277, %v1486
  %v1500 = vmul.f32 %v1281, %v1486
  %v1501 = vmul.f32 %v1285, %v1486
  %v1502 = vmul.f32 %v1289, %v1486
  %v1503 = vmul.f32 %v1293, %v1486
  %v1504 = vmul.f32 %v1297, %v1486
  %v1505 = vmul.f32 %v1301, %v1486
  %v1506 = vmul.f32 %v1305, %v1486
  %v1507 = vmul.f32 %v1309, %v1486
  %v1508 = vmul.f32 %v1313, %v1486
  %v1509 = vmul.f32 %v1317, %v1486
  %v1510 = vmul.f32 %v1321, %v1486
  %v1511 = vmul.f32 %v1325, %v1486
  %v1512 = vmul.f32 %v1329, %v1486
  %v1513 = vmul.f32 %v1333, %v1486
  %v1514 = vmul.f32 %v1337, %v1486
  %v1515 = vmul.f32 %v1341, %v1486
  %v1516 = vmul.f32 %v1345, %v1486
  %v1517 = vmul.f32 %v1349, %v1486
  %v1518 = vmul.f32 %v1353, %v1486
  %v1519 = vmul.f32 %v1357, %v1486
  %v1520 = vmul.f32 %v1361, %v1486
  %v1521 = vmul.f32 %v1365, %v1486
  %v1522 = vmul.f32 %v1369, %v1486
  %v1523 = vmul.f32 %v1373, %v1486
  %v1524 = vmul.f32 %v1377, %v1486
  %v1525 = vmul.f32 %v1381, %v1486
  %v1526 = vmul.f32 %v1385, %v1486
  %v1527 = vmul.f32 %v1389, %v1486
  %v1528 = vmul.f32 %v1393, %v1486
  %v1529 = vmul.f32 %v1397, %v1486
  %v1530 = vmul.f32 %v1401, %v1486
  %v1531 = vmul.f32 %v1405, %v1486
  %v1532 = vmul.f32 %v1409, %v1486
  %v1533 = vmul.f32 %v1413, %v1486
  %v1534 = vmul.f32 %v1417, %v1486
  %v1535 = vmul.f32 %v1421, %v1486
  %v1536 = vmul.f32 %v1425, %v1486
  %v1537 = vmul.f32 %v1429, %v1486
  %v1538 = vmul.f32 %v1433, %v1486
  %v1539 = vmul.f32 %v1437, %v1486
  %v1540 = vmul.f32 %v1441, %v1486
  %v1541 = vmul.f32 %v1445, %v1486
  %v1542 = vmul.f32 %v1449, %v1486
  %v1543 = vmul.f32 %v1453, %v1486
  %v1544 = vmul.f32 %v1457, %v1486
  %v1545 = vmul.f32 %v1461, %v1486
  %v1546 = vmul.f32 %v1465, %v1486
  %v1547 = vmul.f32 %v1469, %v1486
  %v1548 = vmul.f32 %v1473, %v1486
  %v1549 = vmul.f32 %v1477, %v1486
  %v1550 = vmul.f32 %v1481, %v1486
  %v1551 = vadd.f32 %v1163, %v1487
  %v1552 = vadd.f32 %v1164, %v1488
  %v1553 = vadd.f32 %v1165, %v1489
  %v1554 = vadd.f32 %v1166, %v1490
  %v1555 = vadd.f32 %v1167, %v1491
  %v1556 = vadd.f32 %v1168, %v1492
  %v1557 = vadd.f32 %v1169, %v1493
  %v1558 = vadd.f32 %v1170, %v1494
  %v1559 = vadd.f32 %v1171, %v1495
  %v1560 = vadd.f32 %v1172, %v1496
  %v1561 = vadd.f32 %v1173, %v1497
  %v1562 = vadd.f32 %v1174, %v1498
  %v1563 = vadd.f32 %v1175, %v1499
  %v1564 = vadd.f32 %v1176, %v1500
  %v1565 = vadd.f32 %v1177, %v1501
  %v1566 = vadd.f32 %v1178, %v1502
  %v1567 = vadd.f32 %v1179, %v1503
  %v1568 = vadd.f32 %v1180, %v1504
  %v1569 = vadd.f32 %v1181, %v1505
  %v1570 = vadd.f32 %v1182, %v1506
  %v1571 = vadd.f32 %v1183, %v1507
  %v1572 = vadd.f32 %v1184, %v1508
  %v1573 = vadd.f32 %v1185, %v1509
  %v1574 = vadd.f32 %v1186, %v1510
  %v1575 = vadd.f32 %v1187, %v1511
  %v1576 = vadd.f32 %v1188, %v1512
  %v1577 = vadd.f32 %v1189, %v1513
  %v1578 = vadd.f32 %v1190, %v1514
  %v1579 = vadd.f32 %v1191, %v1515
  %v1580 = vadd.f32 %v1192, %v1516
  %v1581 = vadd.f32 %v1193, %v1517
  %v1582 = vadd.f32 %v1194, %v1518
  %v1583 = vadd.f32 %v1195, %v1519
  %v1584 = vadd.f32 %v1196, %v1520
  %v1585 = vadd.f32 %v1197, %v1521
  %v1586 = vadd.f32 %v1198, %v1522
  %v1587 = vadd.f32 %v1199, %v1523
  %v1588 = vadd.f32 %v1200, %v1524
  %v1589 = vadd.f32 %v1201, %v1525
  %v1590 = vadd.f32 %v1202, %v1526
  %v1591 = vadd.f32 %v1203, %v1527
  %v1592 = vadd.f32 %v1204, %v1528
  %v1593 = vadd.f32 %v1205, %v1529
  %v1594 = vadd.f32 %v1206, %v1530
  %v1595 = vadd.f32 %v1207, %v1531
  %v1596 = vadd.f32 %v1208, %v1532
  %v1597 = vadd.f32 %v1209, %v1533
  %v1598 = vadd.f32 %v1210, %v1534
  %v1599 = vadd.f32 %v1211, %v1535
  %v1600 = vadd.f32 %v1212, %v1536
  %v1601 = vadd.f32 %v1213, %v1537
  %v1602 = vadd.f32 %v1214, %v1538
  %v1603 = vadd.f32 %v1215, %v1539
  %v1604 = vadd.f32 %v1216, %v1540
  %v1605 = vadd.f32 %v1217, %v1541
  %v1606 = vadd.f32 %v1218, %v1542
  %v1607 = vadd.f32 %v1219, %v1543
  %v1608 = vadd.f32 %v1220, %v1544
  %v1609 = vadd.f32 %v1221, %v1545
  %v1610 = vadd.f32 %v1222, %v1546
  %v1611 = vadd.f32 %v1223, %v1547
  %v1612 = vadd.f32 %v1224, %v1548
  %v1613 = vadd.f32 %v1225, %v1549
  %v1614 = vadd.f32 %v1226, %v1550
  %v1615 = vmax.f32 %v1551, 0.0
  %v1616 = vmax.f32 %v1552, 0.0
  %v1617 = vmax.f32 %v1553, 0.0
  %v1618 = vmax.f32 %v1554, 0.0
  %v1619 = vmax.f32 %v1555, 0.0
  %v1620 = vmax.f32 %v1556, 0.0
  %v1621 = vmax.f32 %v1557, 0.0
  %v1622 = vmax.f32 %v1558, 0.0
  %v1623 = vmax.f32 %v1559, 0.0
  %v1624 = vmax.f32 %v1560, 0.0
  %v1625 = vmax.f32 %v1561, 0.0
  %v1626 = vmax.f32 %v1562, 0.0
  %v1627 = vmax.f32 %v1563, 0.0
  %v1628 = vmax.f32 %v1564, 0.0
  %v1629 = vmax.f32 %v1565, 0.0
  %v1630 = vmax.f32 %v1566, 0.0
  %v1631 = vmax.f32 %v1567, 0.0
  %v1632 = vmax.f32 %v1568, 0.0
  %v1633 = vmax.f32 %v1569, 0.0
  %v1634 = vmax.f32 %v1570, 0.0
  %v1635 = vmax.f32 %v1571, 0.0
  %v1636 = vmax.f32 %v1572, 0.0
  %v1637 = vmax.f32 %v1573, 0.0
  %v1638 = vmax.f32 %v1574, 0.0
  %v1639 = vmax.f32 %v1575, 0.0
  %v1640 = vmax.f32 %v1576, 0.0
  %v1641 = vmax.f32 %v1577, 0.0
  %v1642 = vmax.f32 %v1578, 0.0
  %v1643 = vmax.f32 %v1579, 0.0
  %v1644 = vmax.f32 %v1580, 0.0
  %v1645 = vmax.f32 %v1581, 0.0
  %v1646 = vmax.f32 %v1582, 0.0
  %v1647 = vmax.f32 %v1583, 0.0
  %v1648 = vmax.f32 %v1584, 0.0
  %v1649 = vmax.f32 %v1585, 0.0
  %v1650 = vmax.f32 %v1586, 0.0
  %v1651 = vmax.f32 %v1587, 0.0
  %v1652 = vmax.f32 %v1588, 0.0
  %v1653 = vmax.f32 %v1589, 0.0
  %v1654 = vmax.f32 %v1590, 0.0
  %v1655 = vmax.f32 %v1591, 0.0
  %v1656 = vmax.f32 %v1592, 0.0
  %v1657 = vmax.f32 %v1593, 0.0
  %v1658 = vmax.f32 %v1594, 0.0
  %v1659 = vmax.f32 %v1595, 0.0
  %v1660 = vmax.f32 %v1596, 0.0
  %v1661 = vmax.f32 %v1597, 0.0
  %v1662 = vmax.f32 %v1598, 0.0
  %v1663 = vmax.f32 %v1599, 0.0
  %v1664 = vmax.f32 %v1600, 0.0
  %v1665 = vmax.f32 %v1601, 0.0
  %v1666 = vmax.f32 %v1602, 0.0
  %v1667 = vmax.f32 %v1603, 0.0
  %v1668 = vmax.f32 %v1604, 0.0
  %v1669 = vmax.f32 %v1605, 0.0
  %v1670 = vmax.f32 %v1606, 0.0
  %v1671 = vmax.f32 %v1607, 0.0
  %v1672 = vmax.f32 %v1608, 0.0
  %v1673 = vmax.f32 %v1609, 0.0
  %v1674 = vmax.f32 %v1610, 0.0
  %v1675 = vmax.f32 %v1611, 0.0
  %v1676 = vmax.f32 %v1612, 0.0
  %v1677 = vmax.f32 %v1613, 0.0
  %v1678 = vmax.f32 %v1614, 0.0
  %v1679 = vpack.c.bf16 %v1616, %v1615
  %v1680 = vpack.c.bf16 %v1618, %v1617
  %v1681 = vpack.c.bf16 %v1620, %v1619
  %v1682 = vpack.c.bf16 %v1622, %v1621
  %v1683 = vpack.c.bf16 %v1624, %v1623
  %v1684 = vpack.c.bf16 %v1626, %v1625
  %v1685 = vpack.c.bf16 %v1628, %v1627
  %v1686 = vpack.c.bf16 %v1630, %v1629
  %v1687 = vpack.c.bf16 %v1632, %v1631
  %v1688 = vpack.c.bf16 %v1634, %v1633
  %v1689 = vpack.c.bf16 %v1636, %v1635
  %v1690 = vpack.c.bf16 %v1638, %v1637
  %v1691 = vpack.c.bf16 %v1640, %v1639
  %v1692 = vpack.c.bf16 %v1642, %v1641
  %v1693 = vpack.c.bf16 %v1644, %v1643
  %v1694 = vpack.c.bf16 %v1646, %v1645
  %v1695 = vpack.c.bf16 %v1648, %v1647
  %v1696 = vpack.c.bf16 %v1650, %v1649
  %v1697 = vpack.c.bf16 %v1652, %v1651
  %v1698 = vpack.c.bf16 %v1654, %v1653
  %v1699 = vpack.c.bf16 %v1656, %v1655
  %v1700 = vpack.c.bf16 %v1658, %v1657
  %v1701 = vpack.c.bf16 %v1660, %v1659
  %v1702 = vpack.c.bf16 %v1662, %v1661
  %v1703 = vpack.c.bf16 %v1664, %v1663
  %v1704 = vpack.c.bf16 %v1666, %v1665
  %v1705 = vpack.c.bf16 %v1668, %v1667
  %v1706 = vpack.c.bf16 %v1670, %v1669
  %v1707 = vpack.c.bf16 %v1672, %v1671
  %v1708 = vpack.c.bf16 %v1674, %v1673
  %v1709 = vpack.c.bf16 %v1676, %v1675
  %v1710 = vpack.c.bf16 %v1678, %v1677
  %v1711 = vld [vmem:[%s2] sm:$0xff]
  %v1712 = vld [vmem:[%s2 + $0x8] sm:$0xff]
  %v1713 = vld [vmem:[%s2 + $0x10] sm:$0xff]
  %v1714 = vld [vmem:[%s2 + $0x18] sm:$0xff]
  %v1715 = vld [vmem:[%s2 + $0x20] sm:$0xff]
  %v1716 = vld [vmem:[%s2 + $0x28] sm:$0xff]
  %v1717 = vld [vmem:[%s2 + $0x30] sm:$0xff]
  %v1718 = vld [vmem:[%s2 + $0x38] sm:$0xff]
  %v1719 = vld [vmem:[%s2 + $0x40] sm:$0xff]
  %v1720 = vld [vmem:[%s2 + $0x48] sm:$0xff]
  %v1721 = vld [vmem:[%s2 + $0x50] sm:$0xff]
  %v1722 = vld [vmem:[%s2 + $0x58] sm:$0xff]
  %v1723 = vld [vmem:[%s2 + $0x60] sm:$0xff]
  %v1724 = vld [vmem:[%s2 + $0x68] sm:$0xff]
  %v1725 = vld [vmem:[%s2 + $0x70] sm:$0xff]
  %v1726 = vld [vmem:[%s2 + $0x78] sm:$0xff]
  %v1727 = vld [vmem:[%s2 + $0x80] sm:$0xff]
  %v1728 = vld [vmem:[%s2 + $0x88] sm:$0xff]
  %v1729 = vld [vmem:[%s2 + $0x90] sm:$0xff]
  %v1730 = vld [vmem:[%s2 + $0x98] sm:$0xff]
  %v1731 = vld [vmem:[%s2 + $0xa0] sm:$0xff]
  %v1732 = vld [vmem:[%s2 + $0xa8] sm:$0xff]
  %v1733 = vld [vmem:[%s2 + $0xb0] sm:$0xff]
  %v1734 = vld [vmem:[%s2 + $0xb8] sm:$0xff]
  %v1735 = vld [vmem:[%s2 + $0xc0] sm:$0xff]
  %v1736 = vld [vmem:[%s2 + $0xc8] sm:$0xff]
  %v1737 = vld [vmem:[%s2 + $0xd0] sm:$0xff]
  %v1738 = vld [vmem:[%s2 + $0xd8] sm:$0xff]
  %v1739 = vld [vmem:[%s2 + $0xe0] sm:$0xff]
  %v1740 = vld [vmem:[%s2 + $0xe8] sm:$0xff]
  %v1741 = vld [vmem:[%s2 + $0xf0] sm:$0xff]
  %v1742 = vld [vmem:[%s2 + $0xf8] sm:$0xff]
  %v1743 = vld [vmem:[%s2 + $0x100] sm:$0xff]
  %v1744 = vld [vmem:[%s2 + $0x108] sm:$0xff]
  %v1745 = vld [vmem:[%s2 + $0x110] sm:$0xff]
  %v1746 = vld [vmem:[%s2 + $0x118] sm:$0xff]
  %v1747 = vld [vmem:[%s2 + $0x120] sm:$0xff]
  %v1748 = vld [vmem:[%s2 + $0x128] sm:$0xff]
  %v1749 = vld [vmem:[%s2 + $0x130] sm:$0xff]
  %v1750 = vld [vmem:[%s2 + $0x138] sm:$0xff]
  %v1751 = vld [vmem:[%s2 + $0x140] sm:$0xff]
  %v1752 = vld [vmem:[%s2 + $0x148] sm:$0xff]
  %v1753 = vld [vmem:[%s2 + $0x150] sm:$0xff]
  %v1754 = vld [vmem:[%s2 + $0x158] sm:$0xff]
  %v1755 = vld [vmem:[%s2 + $0x160] sm:$0xff]
  %v1756 = vld [vmem:[%s2 + $0x168] sm:$0xff]
  %v1757 = vld [vmem:[%s2 + $0x170] sm:$0xff]
  %v1758 = vld [vmem:[%s2 + $0x178] sm:$0xff]
  %v1759 = vld [vmem:[%s2 + $0x180] sm:$0xff]
  %v1760 = vld [vmem:[%s2 + $0x188] sm:$0xff]
  %v1761 = vld [vmem:[%s2 + $0x190] sm:$0xff]
  %v1762 = vld [vmem:[%s2 + $0x198] sm:$0xff]
  %v1763 = vld [vmem:[%s2 + $0x1a0] sm:$0xff]
  %v1764 = vld [vmem:[%s2 + $0x1a8] sm:$0xff]
  %v1765 = vld [vmem:[%s2 + $0x1b0] sm:$0xff]
  %v1766 = vld [vmem:[%s2 + $0x1b8] sm:$0xff]
  %v1767 = vld [vmem:[%s2 + $0x1c0] sm:$0xff]
  %v1768 = vld [vmem:[%s2 + $0x1c8] sm:$0xff]
  %v1769 = vld [vmem:[%s2 + $0x1d0] sm:$0xff]
  %v1770 = vld [vmem:[%s2 + $0x1d8] sm:$0xff]
  %v1771 = vld [vmem:[%s2 + $0x1e0] sm:$0xff]
  %v1772 = vld [vmem:[%s2 + $0x1e8] sm:$0xff]
  %v1773 = vld [vmem:[%s2 + $0x1f0] sm:$0xff]
  %v1774 = vld [vmem:[%s2 + $0x1f8] sm:$0xff]
  %v1775 = vld [vmem:[%s2 + $0x200] sm:$0xff]
  %v1776 = vld [vmem:[%s2 + $0x208] sm:$0xff]
  %v1777 = vld [vmem:[%s2 + $0x210] sm:$0xff]
  %v1778 = vld [vmem:[%s2 + $0x218] sm:$0xff]
  %v1779 = vld [vmem:[%s2 + $0x220] sm:$0xff]
  %v1780 = vld [vmem:[%s2 + $0x228] sm:$0xff]
  %v1781 = vld [vmem:[%s2 + $0x230] sm:$0xff]
  %v1782 = vld [vmem:[%s2 + $0x238] sm:$0xff]
  %v1783 = vld [vmem:[%s2 + $0x240] sm:$0xff]
  %v1784 = vld [vmem:[%s2 + $0x248] sm:$0xff]
  %v1785 = vld [vmem:[%s2 + $0x250] sm:$0xff]
  %v1786 = vld [vmem:[%s2 + $0x258] sm:$0xff]
  %v1787 = vld [vmem:[%s2 + $0x260] sm:$0xff]
  %v1788 = vld [vmem:[%s2 + $0x268] sm:$0xff]
  %v1789 = vld [vmem:[%s2 + $0x270] sm:$0xff]
  %v1790 = vld [vmem:[%s2 + $0x278] sm:$0xff]
  %v1791 = vld [vmem:[%s2 + $0x280] sm:$0xff]
  %v1792 = vld [vmem:[%s2 + $0x288] sm:$0xff]
  %v1793 = vld [vmem:[%s2 + $0x290] sm:$0xff]
  %v1794 = vld [vmem:[%s2 + $0x298] sm:$0xff]
  %v1795 = vld [vmem:[%s2 + $0x2a0] sm:$0xff]
  %v1796 = vld [vmem:[%s2 + $0x2a8] sm:$0xff]
  %v1797 = vld [vmem:[%s2 + $0x2b0] sm:$0xff]
  %v1798 = vld [vmem:[%s2 + $0x2b8] sm:$0xff]
  %v1799 = vld [vmem:[%s2 + $0x2c0] sm:$0xff]
  %v1800 = vld [vmem:[%s2 + $0x2c8] sm:$0xff]
  %v1801 = vld [vmem:[%s2 + $0x2d0] sm:$0xff]
  %v1802 = vld [vmem:[%s2 + $0x2d8] sm:$0xff]
  %v1803 = vld [vmem:[%s2 + $0x2e0] sm:$0xff]
  %v1804 = vld [vmem:[%s2 + $0x2e8] sm:$0xff]
  %v1805 = vld [vmem:[%s2 + $0x2f0] sm:$0xff]
  %v1806 = vld [vmem:[%s2 + $0x2f8] sm:$0xff]
  %1808 = vset.pattern.permute.xlu0 0
  %1809 = vperm.xlu0 %1808, %v83
  %v1810 = vpop.permute.xlu0 %1809
  %1813 = vset.pattern.permute.xlu0 0
  %1814 = vperm.xlu0 %1813, %v84
  %v1815 = vpop.permute.xlu0 %1814
  %1818 = vset.pattern.permute.xlu0 0
  %1819 = vperm.xlu0 %1818, %v85
  %v1820 = vpop.permute.xlu0 %1819
  %1823 = vset.pattern.permute.xlu0 0
  %1824 = vperm.xlu0 %1823, %v86
  %v1825 = vpop.permute.xlu0 %1824
  %1828 = vset.pattern.permute.xlu0 0
  %1829 = vperm.xlu0 %1828, %v87
  %v1830 = vpop.permute.xlu0 %1829
  %1833 = vset.pattern.permute.xlu0 0
  %1834 = vperm.xlu0 %1833, %v88
  %v1835 = vpop.permute.xlu0 %1834
  %1838 = vset.pattern.permute.xlu0 0
  %1839 = vperm.xlu0 %1838, %v89
  %v1840 = vpop.permute.xlu0 %1839
  %1843 = vset.pattern.permute.xlu0 0
  %1844 = vperm.xlu0 %1843, %v90
  %v1845 = vpop.permute.xlu0 %1844
  %1848 = vset.pattern.permute.xlu0 0
  %1849 = vperm.xlu0 %1848, %v91
  %v1850 = vpop.permute.xlu0 %1849
  %1853 = vset.pattern.permute.xlu0 0
  %1854 = vperm.xlu0 %1853, %v92
  %v1855 = vpop.permute.xlu0 %1854
  %1858 = vset.pattern.permute.xlu0 0
  %1859 = vperm.xlu0 %1858, %v93
  %v1860 = vpop.permute.xlu0 %1859
  %1863 = vset.pattern.permute.xlu0 0
  %1864 = vperm.xlu0 %1863, %v94
  %v1865 = vpop.permute.xlu0 %1864
  %1868 = vset.pattern.permute.xlu0 0
  %1869 = vperm.xlu0 %1868, %v95
  %v1870 = vpop.permute.xlu0 %1869
  %1873 = vset.pattern.permute.xlu0 0
  %1874 = vperm.xlu0 %1873, %v96
  %v1875 = vpop.permute.xlu0 %1874
  %1878 = vset.pattern.permute.xlu0 0
  %1879 = vperm.xlu0 %1878, %v97
  %v1880 = vpop.permute.xlu0 %1879
  %1883 = vset.pattern.permute.xlu0 0
  %1884 = vperm.xlu0 %1883, %v98
  %v1885 = vpop.permute.xlu0 %1884
  %1888 = vset.pattern.permute.xlu0 0
  %1889 = vperm.xlu0 %1888, %v99
  %v1890 = vpop.permute.xlu0 %1889
  %1893 = vset.pattern.permute.xlu0 0
  %1894 = vperm.xlu0 %1893, %v100
  %v1895 = vpop.permute.xlu0 %1894
  %1898 = vset.pattern.permute.xlu0 0
  %1899 = vperm.xlu0 %1898, %v101
  %v1900 = vpop.permute.xlu0 %1899
  %1903 = vset.pattern.permute.xlu0 0
  %1904 = vperm.xlu0 %1903, %v102
  %v1905 = vpop.permute.xlu0 %1904
  %1908 = vset.pattern.permute.xlu0 0
  %1909 = vperm.xlu0 %1908, %v103
  %v1910 = vpop.permute.xlu0 %1909
  %1913 = vset.pattern.permute.xlu0 0
  %1914 = vperm.xlu0 %1913, %v104
  %v1915 = vpop.permute.xlu0 %1914
  %1918 = vset.pattern.permute.xlu0 0
  %1919 = vperm.xlu0 %1918, %v105
  %v1920 = vpop.permute.xlu0 %1919
  %1923 = vset.pattern.permute.xlu0 0
  %1924 = vperm.xlu0 %1923, %v106
  %v1925 = vpop.permute.xlu0 %1924
  %1928 = vset.pattern.permute.xlu0 0
  %1929 = vperm.xlu0 %1928, %v107
  %v1930 = vpop.permute.xlu0 %1929
  %1933 = vset.pattern.permute.xlu0 0
  %1934 = vperm.xlu0 %1933, %v108
  %v1935 = vpop.permute.xlu0 %1934
  %1938 = vset.pattern.permute.xlu0 0
  %1939 = vperm.xlu0 %1938, %v109
  %v1940 = vpop.permute.xlu0 %1939
  %1943 = vset.pattern.permute.xlu0 0
  %1944 = vperm.xlu0 %1943, %v110
  %v1945 = vpop.permute.xlu0 %1944
  %1948 = vset.pattern.permute.xlu0 0
  %1949 = vperm.xlu0 %1948, %v111
  %v1950 = vpop.permute.xlu0 %1949
  %1953 = vset.pattern.permute.xlu0 0
  %1954 = vperm.xlu0 %1953, %v112
  %v1955 = vpop.permute.xlu0 %1954
  %1958 = vset.pattern.permute.xlu0 0
  %1959 = vperm.xlu0 %1958, %v113
  %v1960 = vpop.permute.xlu0 %1959
  %1963 = vset.pattern.permute.xlu0 0
  %1964 = vperm.xlu0 %1963, %v114
  %v1965 = vpop.permute.xlu0 %1964
  %1968 = vset.pattern.permute.xlu0 0
  %1969 = vperm.xlu0 %1968, %v115
  %v1970 = vpop.permute.xlu0 %1969
  %1973 = vset.pattern.permute.xlu0 0
  %1974 = vperm.xlu0 %1973, %v116
  %v1975 = vpop.permute.xlu0 %1974
  %1978 = vset.pattern.permute.xlu0 0
  %1979 = vperm.xlu0 %1978, %v117
  %v1980 = vpop.permute.xlu0 %1979
  %1983 = vset.pattern.permute.xlu0 0
  %1984 = vperm.xlu0 %1983, %v118
  %v1985 = vpop.permute.xlu0 %1984
  %1988 = vset.pattern.permute.xlu0 0
  %1989 = vperm.xlu0 %1988, %v119
  %v1990 = vpop.permute.xlu0 %1989
  %1993 = vset.pattern.permute.xlu0 0
  %1994 = vperm.xlu0 %1993, %v120
  %v1995 = vpop.permute.xlu0 %1994
  %1998 = vset.pattern.permute.xlu0 0
  %1999 = vperm.xlu0 %1998, %v121
  %v2000 = vpop.permute.xlu0 %1999
  %2003 = vset.pattern.permute.xlu0 0
  %2004 = vperm.xlu0 %2003, %v122
  %v2005 = vpop.permute.xlu0 %2004
  %2008 = vset.pattern.permute.xlu0 0
  %2009 = vperm.xlu0 %2008, %v123
  %v2010 = vpop.permute.xlu0 %2009
  %2013 = vset.pattern.permute.xlu0 0
  %2014 = vperm.xlu0 %2013, %v124
  %v2015 = vpop.permute.xlu0 %2014
  %2018 = vset.pattern.permute.xlu0 0
  %2019 = vperm.xlu0 %2018, %v125
  %v2020 = vpop.permute.xlu0 %2019
  %2023 = vset.pattern.permute.xlu0 0
  %2024 = vperm.xlu0 %2023, %v126
  %v2025 = vpop.permute.xlu0 %2024
  %2028 = vset.pattern.permute.xlu0 0
  %2029 = vperm.xlu0 %2028, %v127
  %v2030 = vpop.permute.xlu0 %2029
  %2033 = vset.pattern.permute.xlu0 0
  %2034 = vperm.xlu0 %2033, %v128
  %v2035 = vpop.permute.xlu0 %2034
  %2038 = vset.pattern.permute.xlu0 0
  %2039 = vperm.xlu0 %2038, %v129
  %v2040 = vpop.permute.xlu0 %2039
  %2043 = vset.pattern.permute.xlu0 0
  %2044 = vperm.xlu0 %2043, %v130
  %v2045 = vpop.permute.xlu0 %2044
  %v2047 = vlaneseq
  %v2048 = vshrl.u32 %v2047, 7
  %v2049 = vsub.s32 3, %v2048
  %v2050 = vrot.slane %v18, %v2049
  %v2051 = vmul.f32 %v1810, %v2050
  %v2052 = vmul.f32 %v1815, %v2050
  %v2053 = vmul.f32 %v1820, %v2050
  %v2054 = vmul.f32 %v1825, %v2050
  %v2055 = vmul.f32 %v1830, %v2050
  %v2056 = vmul.f32 %v1835, %v2050
  %v2057 = vmul.f32 %v1840, %v2050
  %v2058 = vmul.f32 %v1845, %v2050
  %v2059 = vmul.f32 %v1850, %v2050
  %v2060 = vmul.f32 %v1855, %v2050
  %v2061 = vmul.f32 %v1860, %v2050
  %v2062 = vmul.f32 %v1865, %v2050
  %v2063 = vmul.f32 %v1870, %v2050
  %v2064 = vmul.f32 %v1875, %v2050
  %v2065 = vmul.f32 %v1880, %v2050
  %v2066 = vmul.f32 %v1885, %v2050
  %v2067 = vmul.f32 %v1890, %v2050
  %v2068 = vmul.f32 %v1895, %v2050
  %v2069 = vmul.f32 %v1900, %v2050
  %v2070 = vmul.f32 %v1905, %v2050
  %v2071 = vmul.f32 %v1910, %v2050
  %v2072 = vmul.f32 %v1915, %v2050
  %v2073 = vmul.f32 %v1920, %v2050
  %v2074 = vmul.f32 %v1925, %v2050
  %v2075 = vmul.f32 %v1930, %v2050
  %v2076 = vmul.f32 %v1935, %v2050
  %v2077 = vmul.f32 %v1940, %v2050
  %v2078 = vmul.f32 %v1945, %v2050
  %v2079 = vmul.f32 %v1950, %v2050
  %v2080 = vmul.f32 %v1955, %v2050
  %v2081 = vmul.f32 %v1960, %v2050
  %v2082 = vmul.f32 %v1965, %v2050
  %v2083 = vmul.f32 %v1970, %v2050
  %v2084 = vmul.f32 %v1975, %v2050
  %v2085 = vmul.f32 %v1980, %v2050
  %v2086 = vmul.f32 %v1985, %v2050
  %v2087 = vmul.f32 %v1990, %v2050
  %v2088 = vmul.f32 %v1995, %v2050
  %v2089 = vmul.f32 %v2000, %v2050
  %v2090 = vmul.f32 %v2005, %v2050
  %v2091 = vmul.f32 %v2010, %v2050
  %v2092 = vmul.f32 %v2015, %v2050
  %v2093 = vmul.f32 %v2020, %v2050
  %v2094 = vmul.f32 %v2025, %v2050
  %v2095 = vmul.f32 %v2030, %v2050
  %v2096 = vmul.f32 %v2035, %v2050
  %v2097 = vmul.f32 %v2040, %v2050
  %v2098 = vmul.f32 %v2045, %v2050
  %v2195 = vunpack.c.l.b16 %v1711
  %v2196 = vunpack.c.h.b16 %v1711
  %v2197 = vunpack.c.l.b16 %v1712
  %v2198 = vunpack.c.h.b16 %v1712
  %v2199 = vunpack.c.l.b16 %v1713
  %v2200 = vunpack.c.h.b16 %v1713
  %v2201 = vunpack.c.l.b16 %v1714
  %v2202 = vunpack.c.h.b16 %v1714
  %v2203 = vunpack.c.l.b16 %v1715
  %v2204 = vunpack.c.h.b16 %v1715
  %v2205 = vunpack.c.l.b16 %v1716
  %v2206 = vunpack.c.h.b16 %v1716
  %v2207 = vunpack.c.l.b16 %v1717
  %v2208 = vunpack.c.h.b16 %v1717
  %v2209 = vunpack.c.l.b16 %v1718
  %v2210 = vunpack.c.h.b16 %v1718
  %v2211 = vunpack.c.l.b16 %v1719
  %v2212 = vunpack.c.h.b16 %v1719
  %v2213 = vunpack.c.l.b16 %v1720
  %v2214 = vunpack.c.h.b16 %v1720
  %v2215 = vunpack.c.l.b16 %v1721
  %v2216 = vunpack.c.h.b16 %v1721
  %v2217 = vunpack.c.l.b16 %v1722
  %v2218 = vunpack.c.h.b16 %v1722
  %v2219 = vunpack.c.l.b16 %v1723
  %v2220 = vunpack.c.h.b16 %v1723
  %v2221 = vunpack.c.l.b16 %v1724
  %v2222 = vunpack.c.h.b16 %v1724
  %v2223 = vunpack.c.l.b16 %v1725
  %v2224 = vunpack.c.h.b16 %v1725
  %v2225 = vunpack.c.l.b16 %v1726
  %v2226 = vunpack.c.h.b16 %v1726
  %v2227 = vunpack.c.l.b16 %v1727
  %v2228 = vunpack.c.h.b16 %v1727
  %v2229 = vunpack.c.l.b16 %v1728
  %v2230 = vunpack.c.h.b16 %v1728
  %v2231 = vunpack.c.l.b16 %v1729
  %v2232 = vunpack.c.h.b16 %v1729
  %v2233 = vunpack.c.l.b16 %v1730
  %v2234 = vunpack.c.h.b16 %v1730
  %v2235 = vunpack.c.l.b16 %v1731
  %v2236 = vunpack.c.h.b16 %v1731
  %v2237 = vunpack.c.l.b16 %v1732
  %v2238 = vunpack.c.h.b16 %v1732
  %v2239 = vunpack.c.l.b16 %v1733
  %v2240 = vunpack.c.h.b16 %v1733
  %v2241 = vunpack.c.l.b16 %v1734
  %v2242 = vunpack.c.h.b16 %v1734
  %v2243 = vunpack.c.l.b16 %v1735
  %v2244 = vunpack.c.h.b16 %v1735
  %v2245 = vunpack.c.l.b16 %v1736
  %v2246 = vunpack.c.h.b16 %v1736
  %v2247 = vunpack.c.l.b16 %v1737
  %v2248 = vunpack.c.h.b16 %v1737
  %v2249 = vunpack.c.l.b16 %v1738
  %v2250 = vunpack.c.h.b16 %v1738
  %v2251 = vunpack.c.l.b16 %v1739
  %v2252 = vunpack.c.h.b16 %v1739
  %v2253 = vunpack.c.l.b16 %v1740
  %v2254 = vunpack.c.h.b16 %v1740
  %v2255 = vunpack.c.l.b16 %v1741
  %v2256 = vunpack.c.h.b16 %v1741
  %v2257 = vunpack.c.l.b16 %v1742
  %v2258 = vunpack.c.h.b16 %v1742
  %v2259 = vunpack.c.l.b16 %v1743
  %v2260 = vunpack.c.h.b16 %v1743
  %v2261 = vunpack.c.l.b16 %v1744
  %v2262 = vunpack.c.h.b16 %v1744
  %v2263 = vunpack.c.l.b16 %v1745
  %v2264 = vunpack.c.h.b16 %v1745
  %v2265 = vunpack.c.l.b16 %v1746
  %v2266 = vunpack.c.h.b16 %v1746
  %v2267 = vunpack.c.l.b16 %v1747
  %v2268 = vunpack.c.h.b16 %v1747
  %v2269 = vunpack.c.l.b16 %v1748
  %v2270 = vunpack.c.h.b16 %v1748
  %v2271 = vunpack.c.l.b16 %v1749
  %v2272 = vunpack.c.h.b16 %v1749
  %v2273 = vunpack.c.l.b16 %v1750
  %v2274 = vunpack.c.h.b16 %v1750
  %v2275 = vunpack.c.l.b16 %v1751
  %v2276 = vunpack.c.h.b16 %v1751
  %v2277 = vunpack.c.l.b16 %v1752
  %v2278 = vunpack.c.h.b16 %v1752
  %v2279 = vunpack.c.l.b16 %v1753
  %v2280 = vunpack.c.h.b16 %v1753
  %v2281 = vunpack.c.l.b16 %v1754
  %v2282 = vunpack.c.h.b16 %v1754
  %v2283 = vunpack.c.l.b16 %v1755
  %v2284 = vunpack.c.h.b16 %v1755
  %v2285 = vunpack.c.l.b16 %v1756
  %v2286 = vunpack.c.h.b16 %v1756
  %v2287 = vunpack.c.l.b16 %v1757
  %v2288 = vunpack.c.h.b16 %v1757
  %v2289 = vunpack.c.l.b16 %v1758
  %v2290 = vunpack.c.h.b16 %v1758
  %v2291 = vunpack.c.l.b16 %v1759
  %v2292 = vunpack.c.h.b16 %v1759
  %v2293 = vunpack.c.l.b16 %v1760
  %v2294 = vunpack.c.h.b16 %v1760
  %v2295 = vunpack.c.l.b16 %v1761
  %v2296 = vunpack.c.h.b16 %v1761
  %v2297 = vunpack.c.l.b16 %v1762
  %v2298 = vunpack.c.h.b16 %v1762
  %v2299 = vunpack.c.l.b16 %v1763
  %v2300 = vunpack.c.h.b16 %v1763
  %v2301 = vunpack.c.l.b16 %v1764
  %v2302 = vunpack.c.h.b16 %v1764
  %v2303 = vunpack.c.l.b16 %v1765
  %v2304 = vunpack.c.h.b16 %v1765
  %v2305 = vunpack.c.l.b16 %v1766
  %v2306 = vunpack.c.h.b16 %v1766
  %v2307 = vunpack.c.l.b16 %v1767
  %v2308 = vunpack.c.h.b16 %v1767
  %v2309 = vunpack.c.l.b16 %v1768
  %v2310 = vunpack.c.h.b16 %v1768
  %v2311 = vunpack.c.l.b16 %v1769
  %v2312 = vunpack.c.h.b16 %v1769
  %v2313 = vunpack.c.l.b16 %v1770
  %v2314 = vunpack.c.h.b16 %v1770
  %v2315 = vunpack.c.l.b16 %v1771
  %v2316 = vunpack.c.h.b16 %v1771
  %v2317 = vunpack.c.l.b16 %v1772
  %v2318 = vunpack.c.h.b16 %v1772
  %v2319 = vunpack.c.l.b16 %v1773
  %v2320 = vunpack.c.h.b16 %v1773
  %v2321 = vunpack.c.l.b16 %v1774
  %v2322 = vunpack.c.h.b16 %v1774
  %v2323 = vunpack.c.l.b16 %v1775
  %v2324 = vunpack.c.h.b16 %v1775
  %v2325 = vunpack.c.l.b16 %v1776
  %v2326 = vunpack.c.h.b16 %v1776
  %v2327 = vunpack.c.l.b16 %v1777
  %v2328 = vunpack.c.h.b16 %v1777
  %v2329 = vunpack.c.l.b16 %v1778
  %v2330 = vunpack.c.h.b16 %v1778
  %v2331 = vunpack.c.l.b16 %v1779
  %v2332 = vunpack.c.h.b16 %v1779
  %v2333 = vunpack.c.l.b16 %v1780
  %v2334 = vunpack.c.h.b16 %v1780
  %v2335 = vunpack.c.l.b16 %v1781
  %v2336 = vunpack.c.h.b16 %v1781
  %v2337 = vunpack.c.l.b16 %v1782
  %v2338 = vunpack.c.h.b16 %v1782
  %v2339 = vunpack.c.l.b16 %v1783
  %v2340 = vunpack.c.h.b16 %v1783
  %v2341 = vunpack.c.l.b16 %v1784
  %v2342 = vunpack.c.h.b16 %v1784
  %v2343 = vunpack.c.l.b16 %v1785
  %v2344 = vunpack.c.h.b16 %v1785
  %v2345 = vunpack.c.l.b16 %v1786
  %v2346 = vunpack.c.h.b16 %v1786
  %v2347 = vunpack.c.l.b16 %v1787
  %v2348 = vunpack.c.h.b16 %v1787
  %v2349 = vunpack.c.l.b16 %v1788
  %v2350 = vunpack.c.h.b16 %v1788
  %v2351 = vunpack.c.l.b16 %v1789
  %v2352 = vunpack.c.h.b16 %v1789
  %v2353 = vunpack.c.l.b16 %v1790
  %v2354 = vunpack.c.h.b16 %v1790
  %v2355 = vunpack.c.l.b16 %v1791
  %v2356 = vunpack.c.h.b16 %v1791
  %v2357 = vunpack.c.l.b16 %v1792
  %v2358 = vunpack.c.h.b16 %v1792
  %v2359 = vunpack.c.l.b16 %v1793
  %v2360 = vunpack.c.h.b16 %v1793
  %v2361 = vunpack.c.l.b16 %v1794
  %v2362 = vunpack.c.h.b16 %v1794
  %v2363 = vunpack.c.l.b16 %v1795
  %v2364 = vunpack.c.h.b16 %v1795
  %v2365 = vunpack.c.l.b16 %v1796
  %v2366 = vunpack.c.h.b16 %v1796
  %v2367 = vunpack.c.l.b16 %v1797
  %v2368 = vunpack.c.h.b16 %v1797
  %v2369 = vunpack.c.l.b16 %v1798
  %v2370 = vunpack.c.h.b16 %v1798
  %v2371 = vunpack.c.l.b16 %v1799
  %v2372 = vunpack.c.h.b16 %v1799
  %v2373 = vunpack.c.l.b16 %v1800
  %v2374 = vunpack.c.h.b16 %v1800
  %v2375 = vunpack.c.l.b16 %v1801
  %v2376 = vunpack.c.h.b16 %v1801
  %v2377 = vunpack.c.l.b16 %v1802
  %v2378 = vunpack.c.h.b16 %v1802
  %v2379 = vunpack.c.l.b16 %v1803
  %v2380 = vunpack.c.h.b16 %v1803
  %v2381 = vunpack.c.l.b16 %v1804
  %v2382 = vunpack.c.h.b16 %v1804
  %v2383 = vunpack.c.l.b16 %v1805
  %v2384 = vunpack.c.h.b16 %v1805
  %v2385 = vunpack.c.l.b16 %v1806
  %v2386 = vunpack.c.h.b16 %v1806
  %v2387 = vpack.c.b16 %v2199, %v2195
  %v2388 = vpack.c.b16 %v2200, %v2196
  %v2389 = vpack.c.b16 %v2201, %v2197
  %v2390 = vpack.c.b16 %v2202, %v2198
  %v2391 = vpack.c.b16 %v2207, %v2203
  %v2392 = vpack.c.b16 %v2208, %v2204
  %v2393 = vpack.c.b16 %v2209, %v2205
  %v2394 = vpack.c.b16 %v2210, %v2206
  %v2395 = vpack.c.b16 %v2215, %v2211
  %v2396 = vpack.c.b16 %v2216, %v2212
  %v2397 = vpack.c.b16 %v2217, %v2213
  %v2398 = vpack.c.b16 %v2218, %v2214
  %v2399 = vpack.c.b16 %v2223, %v2219
  %v2400 = vpack.c.b16 %v2224, %v2220
  %v2401 = vpack.c.b16 %v2225, %v2221
  %v2402 = vpack.c.b16 %v2226, %v2222
  %v2403 = vpack.c.b16 %v2231, %v2227
  %v2404 = vpack.c.b16 %v2232, %v2228
  %v2405 = vpack.c.b16 %v2233, %v2229
  %v2406 = vpack.c.b16 %v2234, %v2230
  %v2407 = vpack.c.b16 %v2239, %v2235
  %v2408 = vpack.c.b16 %v2240, %v2236
  %v2409 = vpack.c.b16 %v2241, %v2237
  %v2410 = vpack.c.b16 %v2242, %v2238
  %v2411 = vpack.c.b16 %v2247, %v2243
  %v2412 = vpack.c.b16 %v2248, %v2244
  %v2413 = vpack.c.b16 %v2249, %v2245
  %v2414 = vpack.c.b16 %v2250, %v2246
  %v2415 = vpack.c.b16 %v2255, %v2251
  %v2416 = vpack.c.b16 %v2256, %v2252
  %v2417 = vpack.c.b16 %v2257, %v2253
  %v2418 = vpack.c.b16 %v2258, %v2254
  %v2419 = vpack.c.b16 %v2263, %v2259
  %v2420 = vpack.c.b16 %v2264, %v2260
  %v2421 = vpack.c.b16 %v2265, %v2261
  %v2422 = vpack.c.b16 %v2266, %v2262
  %v2423 = vpack.c.b16 %v2271, %v2267
  %v2424 = vpack.c.b16 %v2272, %v2268
  %v2425 = vpack.c.b16 %v2273, %v2269
  %v2426 = vpack.c.b16 %v2274, %v2270
  %v2427 = vpack.c.b16 %v2279, %v2275
  %v2428 = vpack.c.b16 %v2280, %v2276
  %v2429 = vpack.c.b16 %v2281, %v2277
  %v2430 = vpack.c.b16 %v2282, %v2278
  %v2431 = vpack.c.b16 %v2287, %v2283
  %v2432 = vpack.c.b16 %v2288, %v2284
  %v2433 = vpack.c.b16 %v2289, %v2285
  %v2434 = vpack.c.b16 %v2290, %v2286
  %v2435 = vpack.c.b16 %v2295, %v2291
  %v2436 = vpack.c.b16 %v2296, %v2292
  %v2437 = vpack.c.b16 %v2297, %v2293
  %v2438 = vpack.c.b16 %v2298, %v2294
  %v2439 = vpack.c.b16 %v2303, %v2299
  %v2440 = vpack.c.b16 %v2304, %v2300
  %v2441 = vpack.c.b16 %v2305, %v2301
  %v2442 = vpack.c.b16 %v2306, %v2302
  %v2443 = vpack.c.b16 %v2311, %v2307
  %v2444 = vpack.c.b16 %v2312, %v2308
  %v2445 = vpack.c.b16 %v2313, %v2309
  %v2446 = vpack.c.b16 %v2314, %v2310
  %v2447 = vpack.c.b16 %v2319, %v2315
  %v2448 = vpack.c.b16 %v2320, %v2316
  %v2449 = vpack.c.b16 %v2321, %v2317
  %v2450 = vpack.c.b16 %v2322, %v2318
  %v2451 = vpack.c.b16 %v2327, %v2323
  %v2452 = vpack.c.b16 %v2328, %v2324
  %v2453 = vpack.c.b16 %v2329, %v2325
  %v2454 = vpack.c.b16 %v2330, %v2326
  %v2455 = vpack.c.b16 %v2335, %v2331
  %v2456 = vpack.c.b16 %v2336, %v2332
  %v2457 = vpack.c.b16 %v2337, %v2333
  %v2458 = vpack.c.b16 %v2338, %v2334
  %v2459 = vpack.c.b16 %v2343, %v2339
  %v2460 = vpack.c.b16 %v2344, %v2340
  %v2461 = vpack.c.b16 %v2345, %v2341
  %v2462 = vpack.c.b16 %v2346, %v2342
  %v2463 = vpack.c.b16 %v2351, %v2347
  %v2464 = vpack.c.b16 %v2352, %v2348
  %v2465 = vpack.c.b16 %v2353, %v2349
  %v2466 = vpack.c.b16 %v2354, %v2350
  %v2467 = vpack.c.b16 %v2359, %v2355
  %v2468 = vpack.c.b16 %v2360, %v2356
  %v2469 = vpack.c.b16 %v2361, %v2357
  %v2470 = vpack.c.b16 %v2362, %v2358
  %v2471 = vpack.c.b16 %v2367, %v2363
  %v2472 = vpack.c.b16 %v2368, %v2364
  %v2473 = vpack.c.b16 %v2369, %v2365
  %v2474 = vpack.c.b16 %v2370, %v2366
  %v2475 = vpack.c.b16 %v2375, %v2371
  %v2476 = vpack.c.b16 %v2376, %v2372
  %v2477 = vpack.c.b16 %v2377, %v2373
  %v2478 = vpack.c.b16 %v2378, %v2374
  %v2479 = vpack.c.b16 %v2383, %v2379
  %v2480 = vpack.c.b16 %v2384, %v2380
  %v2481 = vpack.c.b16 %v2385, %v2381
  %v2482 = vpack.c.b16 %v2386, %v2382
  %2579 = vmatprep.subr.bf16.mxu0 0
  %2580 = vmatpush1.bf16.msra.mxu0 %v1679
  %2581 = vmatprep.subr.bf16.mxu0 0
  %2582 = vmatpush1.bf16.msra.mxu0 %v1680
  %2583 = vmatprep.subr.bf16.mxu0 0
  %2584 = vmatpush1.bf16.msra.mxu0 %v1681
  %2585 = vmatprep.subr.bf16.mxu0 0
  %2586 = vmatpush1.bf16.msra.mxu0 %v1682
  %2587 = vmatprep.subr.bf16.mxu0 0
  %2588 = vmatpush1.bf16.msra.mxu0 %v1683
  %2589 = vmatprep.subr.bf16.mxu0 0
  %2590 = vmatpush1.bf16.msra.mxu0 %v1684
  %2591 = vmatprep.subr.bf16.mxu0 0
  %2592 = vmatpush1.bf16.msra.mxu0 %v1685
  %2593 = vmatprep.subr.bf16.mxu0 0
  %2594 = vmatpush1.bf16.msra.mxu0 %v1686
  %2595 = vmatprep.subr.bf16.mxu0 0
  %2596 = vmatpush1.bf16.msra.mxu0 %v1687
  %2597 = vmatprep.subr.bf16.mxu0 0
  %2598 = vmatpush1.bf16.msra.mxu0 %v1688
  %2599 = vmatprep.subr.bf16.mxu0 0
  %2600 = vmatpush1.bf16.msra.mxu0 %v1689
  %2601 = vmatprep.subr.bf16.mxu0 0
  %2602 = vmatpush1.bf16.msra.mxu0 %v1690
  %2603 = vmatprep.subr.bf16.mxu0 0
  %2604 = vmatpush1.bf16.msra.mxu0 %v1691
  %2605 = vmatprep.subr.bf16.mxu0 0
  %2606 = vmatpush1.bf16.msra.mxu0 %v1692
  %2607 = vmatprep.subr.bf16.mxu0 0
  %2608 = vmatpush1.bf16.msra.mxu0 %v1693
  %2609 = vmatprep.subr.bf16.mxu0 0
  %2610 = vmatpush1.bf16.msra.mxu0 %v1694
  %2611 = vmatprep.mubr.bf16.mxu0 %v2388
  %2612 = vmatmul.mubr.bf16.gmra.mrb[0].mxu0 %v2387
  %v2613 = vpop.f32.mrb[0].mxu0
  %v2614 = vadd.f32 %v2051, %v2613
  %v2615 = vpop.f32.mrb[0].mxu0
  %v2616 = vpop.f32.mrb[0].mxu0
  %v2617 = vadd.f32 %v2052, %v2616
  %v2618 = vpop.f32.mrb[0].mxu0
  %2619 = vmatprep.mubr.bf16.mxu0 %v2392
  %2620 = vmatmul.mubr.bf16.gmra.mrb[0].mxu0 %v2391
  %v2621 = vpop.f32.mrb[0].mxu0
  %v2622 = vadd.f32 %v2053, %v2621
  %v2623 = vpop.f32.mrb[0].mxu0
  %v2624 = vpop.f32.mrb[0].mxu0
  %v2625 = vadd.f32 %v2054, %v2624
  %v2626 = vpop.f32.mrb[0].mxu0
  %2627 = vmatprep.mubr.bf16.mxu0 %v2396
  %2628 = vmatmul.mubr.bf16.gmra.mrb[0].mxu0 %v2395
  %v2629 = vpop.f32.mrb[0].mxu0
  %v2630 = vadd.f32 %v2055, %v2629
  %v2631 = vpop.f32.mrb[0].mxu0
  %v2632 = vpop.f32.mrb[0].mxu0
  %v2633 = vadd.f32 %v2056, %v2632
  %v2634 = vpop.f32.mrb[0].mxu0
  %2635 = vmatprep.mubr.bf16.mxu0 %v2400
  %2636 = vmatmul.mubr.bf16.gmra.mrb[0].mxu0 %v2399
  %v2637 = vpop.f32.mrb[0].mxu0
  %v2638 = vadd.f32 %v2057, %v2637
  %v2639 = vpop.f32.mrb[0].mxu0
  %v2640 = vpop.f32.mrb[0].mxu0
  %v2641 = vadd.f32 %v2058, %v2640
  %v2642 = vpop.f32.mrb[0].mxu0
  %2643 = vmatprep.mubr.bf16.mxu0 %v2404
  %2644 = vmatmul.mubr.bf16.gmra.mrb[0].mxu0 %v2403
  %v2645 = vpop.f32.mrb[0].mxu0
  %v2646 = vadd.f32 %v2059, %v2645
  %v2647 = vpop.f32.mrb[0].mxu0
  %v2648 = vpop.f32.mrb[0].mxu0
  %v2649 = vadd.f32 %v2060, %v2648
  %v2650 = vpop.f32.mrb[0].mxu0
  %2651 = vmatprep.mubr.bf16.mxu0 %v2408
  %2652 = vmatmul.mubr.bf16.gmra.mrb[0].mxu0 %v2407
  %v2653 = vpop.f32.mrb[0].mxu0
  %v2654 = vadd.f32 %v2061, %v2653
  %v2655 = vpop.f32.mrb[0].mxu0
  %v2656 = vpop.f32.mrb[0].mxu0
  %v2657 = vadd.f32 %v2062, %v2656
  %v2658 = vpop.f32.mrb[0].mxu0
  %2659 = vmatprep.mubr.bf16.mxu0 %v2412
  %2660 = vmatmul.mubr.bf16.gmra.mrb[0].mxu0 %v2411
  %v2661 = vpop.f32.mrb[0].mxu0
  %v2662 = vadd.f32 %v2063, %v2661
  %v2663 = vpop.f32.mrb[0].mxu0
  %v2664 = vpop.f32.mrb[0].mxu0
  %v2665 = vadd.f32 %v2064, %v2664
  %v2666 = vpop.f32.mrb[0].mxu0
  %2667 = vmatprep.mubr.bf16.mxu0 %v2416
  %2668 = vmatmul.mubr.bf16.gmra.mrb[0].mxu0 %v2415
  %v2669 = vpop.f32.mrb[0].mxu0
  %v2670 = vadd.f32 %v2065, %v2669
  %v2671 = vpop.f32.mrb[0].mxu0
  %v2672 = vpop.f32.mrb[0].mxu0
  %v2673 = vadd.f32 %v2066, %v2672
  %v2674 = vpop.f32.mrb[0].mxu0
  %2675 = vmatprep.mubr.bf16.mxu0 %v2420
  %2676 = vmatmul.mubr.bf16.gmra.mrb[0].mxu0 %v2419
  %v2677 = vpop.f32.mrb[0].mxu0
  %v2678 = vadd.f32 %v2067, %v2677
  %v2679 = vpop.f32.mrb[0].mxu0
  %v2680 = vpop.f32.mrb[0].mxu0
  %v2681 = vadd.f32 %v2068, %v2680
  %v2682 = vpop.f32.mrb[0].mxu0
  %2683 = vmatprep.mubr.bf16.mxu0 %v2424
  %2684 = vmatmul.mubr.bf16.gmra.mrb[0].mxu0 %v2423
  %v2685 = vpop.f32.mrb[0].mxu0
  %v2686 = vadd.f32 %v2069, %v2685
  %v2687 = vpop.f32.mrb[0].mxu0
  %v2688 = vpop.f32.mrb[0].mxu0
  %v2689 = vadd.f32 %v2070, %v2688
  %v2690 = vpop.f32.mrb[0].mxu0
  %2691 = vmatprep.mubr.bf16.mxu0 %v2428
  %2692 = vmatmul.mubr.bf16.gmra.mrb[0].mxu0 %v2427
  %v2693 = vpop.f32.mrb[0].mxu0
  %v2694 = vadd.f32 %v2071, %v2693
  %v2695 = vpop.f32.mrb[0].mxu0
  %v2696 = vpop.f32.mrb[0].mxu0
  %v2697 = vadd.f32 %v2072, %v2696
  %v2698 = vpop.f32.mrb[0].mxu0
  %2699 = vmatprep.mubr.bf16.mxu0 %v2432
  %2700 = vmatmul.mubr.bf16.gmra.mrb[0].mxu0 %v2431
  %v2701 = vpop.f32.mrb[0].mxu0
  %v2702 = vadd.f32 %v2073, %v2701
  %v2703 = vpop.f32.mrb[0].mxu0
  %v2704 = vpop.f32.mrb[0].mxu0
  %v2705 = vadd.f32 %v2074, %v2704
  %v2706 = vpop.f32.mrb[0].mxu0
  %2707 = vmatprep.mubr.bf16.mxu0 %v2436
  %2708 = vmatmul.mubr.bf16.gmra.mrb[0].mxu0 %v2435
  %v2709 = vpop.f32.mrb[0].mxu0
  %v2710 = vadd.f32 %v2075, %v2709
  %v2711 = vpop.f32.mrb[0].mxu0
  %v2712 = vpop.f32.mrb[0].mxu0
  %v2713 = vadd.f32 %v2076, %v2712
  %v2714 = vpop.f32.mrb[0].mxu0
  %2715 = vmatprep.mubr.bf16.mxu0 %v2440
  %2716 = vmatmul.mubr.bf16.gmra.mrb[0].mxu0 %v2439
  %v2717 = vpop.f32.mrb[0].mxu0
  %v2718 = vadd.f32 %v2077, %v2717
  %v2719 = vpop.f32.mrb[0].mxu0
  %v2720 = vpop.f32.mrb[0].mxu0
  %v2721 = vadd.f32 %v2078, %v2720
  %v2722 = vpop.f32.mrb[0].mxu0
  %2723 = vmatprep.mubr.bf16.mxu0 %v2444
  %2724 = vmatmul.mubr.bf16.gmra.mrb[0].mxu0 %v2443
  %v2725 = vpop.f32.mrb[0].mxu0
  %v2726 = vadd.f32 %v2079, %v2725
  %v2727 = vpop.f32.mrb[0].mxu0
  %v2728 = vpop.f32.mrb[0].mxu0
  %v2729 = vadd.f32 %v2080, %v2728
  %v2730 = vpop.f32.mrb[0].mxu0
  %2731 = vmatprep.mubr.bf16.mxu0 %v2448
  %2732 = vmatmul.mubr.bf16.gmra.mrb[0].mxu0 %v2447
  %v2733 = vpop.f32.mrb[0].mxu0
  %v2734 = vadd.f32 %v2081, %v2733
  %v2735 = vpop.f32.mrb[0].mxu0
  %v2736 = vpop.f32.mrb[0].mxu0
  %v2737 = vadd.f32 %v2082, %v2736
  %v2738 = vpop.f32.mrb[0].mxu0
  %2739 = vmatprep.mubr.bf16.mxu0 %v2452
  %2740 = vmatmul.mubr.bf16.gmra.mrb[0].mxu0 %v2451
  %v2741 = vpop.f32.mrb[0].mxu0
  %v2742 = vadd.f32 %v2083, %v2741
  %v2743 = vpop.f32.mrb[0].mxu0
  %v2744 = vpop.f32.mrb[0].mxu0
  %v2745 = vadd.f32 %v2084, %v2744
  %v2746 = vpop.f32.mrb[0].mxu0
  %2747 = vmatprep.mubr.bf16.mxu0 %v2456
  %2748 = vmatmul.mubr.bf16.gmra.mrb[0].mxu0 %v2455
  %v2749 = vpop.f32.mrb[0].mxu0
  %v2750 = vadd.f32 %v2085, %v2749
  %v2751 = vpop.f32.mrb[0].mxu0
  %v2752 = vpop.f32.mrb[0].mxu0
  %v2753 = vadd.f32 %v2086, %v2752
  %v2754 = vpop.f32.mrb[0].mxu0
  %2755 = vmatprep.mubr.bf16.mxu0 %v2460
  %2756 = vmatmul.mubr.bf16.gmra.mrb[0].mxu0 %v2459
  %v2757 = vpop.f32.mrb[0].mxu0
  %v2758 = vadd.f32 %v2087, %v2757
  %v2759 = vpop.f32.mrb[0].mxu0
  %v2760 = vpop.f32.mrb[0].mxu0
  %v2761 = vadd.f32 %v2088, %v2760
  %v2762 = vpop.f32.mrb[0].mxu0
  %2763 = vmatprep.mubr.bf16.mxu0 %v2464
  %2764 = vmatmul.mubr.bf16.gmra.mrb[0].mxu0 %v2463
  %v2765 = vpop.f32.mrb[0].mxu0
  %v2766 = vadd.f32 %v2089, %v2765
  %v2767 = vpop.f32.mrb[0].mxu0
  %v2768 = vpop.f32.mrb[0].mxu0
  %v2769 = vadd.f32 %v2090, %v2768
  %v2770 = vpop.f32.mrb[0].mxu0
  %2771 = vmatprep.mubr.bf16.mxu0 %v2468
  %2772 = vmatmul.mubr.bf16.gmra.mrb[0].mxu0 %v2467
  %v2773 = vpop.f32.mrb[0].mxu0
  %v2774 = vadd.f32 %v2091, %v2773
  %v2775 = vpop.f32.mrb[0].mxu0
  %v2776 = vpop.f32.mrb[0].mxu0
  %v2777 = vadd.f32 %v2092, %v2776
  %v2778 = vpop.f32.mrb[0].mxu0
  %2779 = vmatprep.mubr.bf16.mxu0 %v2472
  %2780 = vmatmul.mubr.bf16.gmra.mrb[0].mxu0 %v2471
  %v2781 = vpop.f32.mrb[0].mxu0
  %v2782 = vadd.f32 %v2093, %v2781
  %v2783 = vpop.f32.mrb[0].mxu0
  %v2784 = vpop.f32.mrb[0].mxu0
  %v2785 = vadd.f32 %v2094, %v2784
  %v2786 = vpop.f32.mrb[0].mxu0
  %2787 = vmatprep.mubr.bf16.mxu0 %v2476
  %2788 = vmatmul.mubr.bf16.gmra.mrb[0].mxu0 %v2475
  %v2789 = vpop.f32.mrb[0].mxu0
  %v2790 = vadd.f32 %v2095, %v2789
  %v2791 = vpop.f32.mrb[0].mxu0
  %v2792 = vpop.f32.mrb[0].mxu0
  %v2793 = vadd.f32 %v2096, %v2792
  %v2794 = vpop.f32.mrb[0].mxu0
  %2795 = vmatprep.mubr.bf16.mxu0 %v2480
  %2796 = vmatmul.mubr.bf16.gmra.mrb[0].mxu0 %v2479
  %v2797 = vpop.f32.mrb[0].mxu0
  %v2798 = vadd.f32 %v2097, %v2797
  %v2799 = vpop.f32.mrb[0].mxu0
  %v2800 = vpop.f32.mrb[0].mxu0
  %v2801 = vadd.f32 %v2098, %v2800
  %v2802 = vpop.f32.mrb[0].mxu0
  %2803 = vdwg.mxu0
  %2804 = vmatprep.subr.bf16.mxu0 0
  %2805 = vmatpush1.bf16.msra.mxu0 %v1695
  %2806 = vmatprep.subr.bf16.mxu0 0
  %2807 = vmatpush1.bf16.msra.mxu0 %v1696
  %2808 = vmatprep.subr.bf16.mxu0 0
  %2809 = vmatpush1.bf16.msra.mxu0 %v1697
  %2810 = vmatprep.subr.bf16.mxu0 0
  %2811 = vmatpush1.bf16.msra.mxu0 %v1698
  %2812 = vmatprep.subr.bf16.mxu0 0
  %2813 = vmatpush1.bf16.msra.mxu0 %v1699
  %2814 = vmatprep.subr.bf16.mxu0 0
  %2815 = vmatpush1.bf16.msra.mxu0 %v1700
  %2816 = vmatprep.subr.bf16.mxu0 0
  %2817 = vmatpush1.bf16.msra.mxu0 %v1701
  %2818 = vmatprep.subr.bf16.mxu0 0
  %2819 = vmatpush1.bf16.msra.mxu0 %v1702
  %2820 = vmatprep.subr.bf16.mxu0 0
  %2821 = vmatpush1.bf16.msra.mxu0 %v1703
  %2822 = vmatprep.subr.bf16.mxu0 0
  %2823 = vmatpush1.bf16.msra.mxu0 %v1704
  %2824 = vmatprep.subr.bf16.mxu0 0
  %2825 = vmatpush1.bf16.msra.mxu0 %v1705
  %2826 = vmatprep.subr.bf16.mxu0 0
  %2827 = vmatpush1.bf16.msra.mxu0 %v1706
  %2828 = vmatprep.subr.bf16.mxu0 0
  %2829 = vmatpush1.bf16.msra.mxu0 %v1707
  %2830 = vmatprep.subr.bf16.mxu0 0
  %2831 = vmatpush1.bf16.msra.mxu0 %v1708
  %2832 = vmatprep.subr.bf16.mxu0 0
  %2833 = vmatpush1.bf16.msra.mxu0 %v1709
  %2834 = vmatprep.subr.bf16.mxu0 0
  %2835 = vmatpush1.bf16.msra.mxu0 %v1710
  %2836 = vmatprep.mubr.bf16.mxu0 %v2390
  %2837 = vmatmul.mubr.bf16.gmra.mrb[0].mxu0 %v2389
  %v2838 = vpop.f32.mrb[0].mxu0
  %v2839 = vadd.f32 %v2614, %v2838
  %v2840 = vpop.f32.mrb[0].mxu0
  %v2841 = vpop.f32.mrb[0].mxu0
  %v2842 = vadd.f32 %v2617, %v2841
  %v2843 = vpop.f32.mrb[0].mxu0
  %2844 = vmatprep.mubr.bf16.mxu0 %v2394
  %2845 = vmatmul.mubr.bf16.gmra.mrb[0].mxu0 %v2393
  %v2846 = vpop.f32.mrb[0].mxu0
  %v2847 = vadd.f32 %v2622, %v2846
  %v2848 = vpop.f32.mrb[0].mxu0
  %v2849 = vpop.f32.mrb[0].mxu0
  %v2850 = vadd.f32 %v2625, %v2849
  %v2851 = vpop.f32.mrb[0].mxu0
  %2852 = vmatprep.mubr.bf16.mxu0 %v2398
  %2853 = vmatmul.mubr.bf16.gmra.mrb[0].mxu0 %v2397
  %v2854 = vpop.f32.mrb[0].mxu0
  %v2855 = vadd.f32 %v2630, %v2854
  %v2856 = vpop.f32.mrb[0].mxu0
  %v2857 = vpop.f32.mrb[0].mxu0
  %v2858 = vadd.f32 %v2633, %v2857
  %v2859 = vpop.f32.mrb[0].mxu0
  %2860 = vmatprep.mubr.bf16.mxu0 %v2402
  %2861 = vmatmul.mubr.bf16.gmra.mrb[0].mxu0 %v2401
  %v2862 = vpop.f32.mrb[0].mxu0
  %v2863 = vadd.f32 %v2638, %v2862
  %v2864 = vpop.f32.mrb[0].mxu0
  %v2865 = vpop.f32.mrb[0].mxu0
  %v2866 = vadd.f32 %v2641, %v2865
  %v2867 = vpop.f32.mrb[0].mxu0
  %2868 = vmatprep.mubr.bf16.mxu0 %v2406
  %2869 = vmatmul.mubr.bf16.gmra.mrb[0].mxu0 %v2405
  %v2870 = vpop.f32.mrb[0].mxu0
  %v2871 = vadd.f32 %v2646, %v2870
  %v2872 = vpop.f32.mrb[0].mxu0
  %v2873 = vpop.f32.mrb[0].mxu0
  %v2874 = vadd.f32 %v2649, %v2873
  %v2875 = vpop.f32.mrb[0].mxu0
  %2876 = vmatprep.mubr.bf16.mxu0 %v2410
  %2877 = vmatmul.mubr.bf16.gmra.mrb[0].mxu0 %v2409
  %v2878 = vpop.f32.mrb[0].mxu0
  %v2879 = vadd.f32 %v2654, %v2878
  %v2880 = vpop.f32.mrb[0].mxu0
  %v2881 = vpop.f32.mrb[0].mxu0
  %v2882 = vadd.f32 %v2657, %v2881
  %v2883 = vpop.f32.mrb[0].mxu0
  %2884 = vmatprep.mubr.bf16.mxu0 %v2414
  %2885 = vmatmul.mubr.bf16.gmra.mrb[0].mxu0 %v2413
  %v2886 = vpop.f32.mrb[0].mxu0
  %v2887 = vadd.f32 %v2662, %v2886
  %v2888 = vpop.f32.mrb[0].mxu0
  %v2889 = vpop.f32.mrb[0].mxu0
  %v2890 = vadd.f32 %v2665, %v2889
  %v2891 = vpop.f32.mrb[0].mxu0
  %2892 = vmatprep.mubr.bf16.mxu0 %v2418
  %2893 = vmatmul.mubr.bf16.gmra.mrb[0].mxu0 %v2417
  %v2894 = vpop.f32.mrb[0].mxu0
  %v2895 = vadd.f32 %v2670, %v2894
  %v2896 = vpop.f32.mrb[0].mxu0
  %v2897 = vpop.f32.mrb[0].mxu0
  %v2898 = vadd.f32 %v2673, %v2897
  %v2899 = vpop.f32.mrb[0].mxu0
  %2900 = vmatprep.mubr.bf16.mxu0 %v2422
  %2901 = vmatmul.mubr.bf16.gmra.mrb[0].mxu0 %v2421
  %v2902 = vpop.f32.mrb[0].mxu0
  %v2903 = vadd.f32 %v2678, %v2902
  %v2904 = vpop.f32.mrb[0].mxu0
  %v2905 = vpop.f32.mrb[0].mxu0
  %v2906 = vadd.f32 %v2681, %v2905
  %v2907 = vpop.f32.mrb[0].mxu0
  %2908 = vmatprep.mubr.bf16.mxu0 %v2426
  %2909 = vmatmul.mubr.bf16.gmra.mrb[0].mxu0 %v2425
  %v2910 = vpop.f32.mrb[0].mxu0
  %v2911 = vadd.f32 %v2686, %v2910
  %v2912 = vpop.f32.mrb[0].mxu0
  %v2913 = vpop.f32.mrb[0].mxu0
  %v2914 = vadd.f32 %v2689, %v2913
  %v2915 = vpop.f32.mrb[0].mxu0
  %2916 = vmatprep.mubr.bf16.mxu0 %v2430
  %2917 = vmatmul.mubr.bf16.gmra.mrb[0].mxu0 %v2429
  %v2918 = vpop.f32.mrb[0].mxu0
  %v2919 = vadd.f32 %v2694, %v2918
  %v2920 = vpop.f32.mrb[0].mxu0
  %v2921 = vpop.f32.mrb[0].mxu0
  %v2922 = vadd.f32 %v2697, %v2921
  %v2923 = vpop.f32.mrb[0].mxu0
  %2924 = vmatprep.mubr.bf16.mxu0 %v2434
  %2925 = vmatmul.mubr.bf16.gmra.mrb[0].mxu0 %v2433
  %v2926 = vpop.f32.mrb[0].mxu0
  %v2927 = vadd.f32 %v2702, %v2926
  %v2928 = vpop.f32.mrb[0].mxu0
  %v2929 = vpop.f32.mrb[0].mxu0
  %v2930 = vadd.f32 %v2705, %v2929
  %v2931 = vpop.f32.mrb[0].mxu0
  %2932 = vmatprep.mubr.bf16.mxu0 %v2438
  %2933 = vmatmul.mubr.bf16.gmra.mrb[0].mxu0 %v2437
  %v2934 = vpop.f32.mrb[0].mxu0
  %v2935 = vadd.f32 %v2710, %v2934
  %v2936 = vpop.f32.mrb[0].mxu0
  %v2937 = vpop.f32.mrb[0].mxu0
  %v2938 = vadd.f32 %v2713, %v2937
  %v2939 = vpop.f32.mrb[0].mxu0
  %2940 = vmatprep.mubr.bf16.mxu0 %v2442
  %2941 = vmatmul.mubr.bf16.gmra.mrb[0].mxu0 %v2441
  %v2942 = vpop.f32.mrb[0].mxu0
  %v2943 = vadd.f32 %v2718, %v2942
  %v2944 = vpop.f32.mrb[0].mxu0
  %v2945 = vpop.f32.mrb[0].mxu0
  %v2946 = vadd.f32 %v2721, %v2945
  %v2947 = vpop.f32.mrb[0].mxu0
  %2948 = vmatprep.mubr.bf16.mxu0 %v2446
  %2949 = vmatmul.mubr.bf16.gmra.mrb[0].mxu0 %v2445
  %v2950 = vpop.f32.mrb[0].mxu0
  %v2951 = vadd.f32 %v2726, %v2950
  %v2952 = vpop.f32.mrb[0].mxu0
  %v2953 = vpop.f32.mrb[0].mxu0
  %v2954 = vadd.f32 %v2729, %v2953
  %v2955 = vpop.f32.mrb[0].mxu0
  %2956 = vmatprep.mubr.bf16.mxu0 %v2450
  %2957 = vmatmul.mubr.bf16.gmra.mrb[0].mxu0 %v2449
  %v2958 = vpop.f32.mrb[0].mxu0
  %v2959 = vadd.f32 %v2734, %v2958
  %v2960 = vpop.f32.mrb[0].mxu0
  %v2961 = vpop.f32.mrb[0].mxu0
  %v2962 = vadd.f32 %v2737, %v2961
  %v2963 = vpop.f32.mrb[0].mxu0
  %2964 = vmatprep.mubr.bf16.mxu0 %v2454
  %2965 = vmatmul.mubr.bf16.gmra.mrb[0].mxu0 %v2453
  %v2966 = vpop.f32.mrb[0].mxu0
  %v2967 = vadd.f32 %v2742, %v2966
  %v2968 = vpop.f32.mrb[0].mxu0
  %v2969 = vpop.f32.mrb[0].mxu0
  %v2970 = vadd.f32 %v2745, %v2969
  %v2971 = vpop.f32.mrb[0].mxu0
  %2972 = vmatprep.mubr.bf16.mxu0 %v2458
  %2973 = vmatmul.mubr.bf16.gmra.mrb[0].mxu0 %v2457
  %v2974 = vpop.f32.mrb[0].mxu0
  %v2975 = vadd.f32 %v2750, %v2974
  %v2976 = vpop.f32.mrb[0].mxu0
  %v2977 = vpop.f32.mrb[0].mxu0
  %v2978 = vadd.f32 %v2753, %v2977
  %v2979 = vpop.f32.mrb[0].mxu0
  %2980 = vmatprep.mubr.bf16.mxu0 %v2462
  %2981 = vmatmul.mubr.bf16.gmra.mrb[0].mxu0 %v2461
  %v2982 = vpop.f32.mrb[0].mxu0
  %v2983 = vadd.f32 %v2758, %v2982
  %v2984 = vpop.f32.mrb[0].mxu0
  %v2985 = vpop.f32.mrb[0].mxu0
  %v2986 = vadd.f32 %v2761, %v2985
  %v2987 = vpop.f32.mrb[0].mxu0
  %2988 = vmatprep.mubr.bf16.mxu0 %v2466
  %2989 = vmatmul.mubr.bf16.gmra.mrb[0].mxu0 %v2465
  %v2990 = vpop.f32.mrb[0].mxu0
  %v2991 = vadd.f32 %v2766, %v2990
  %v2992 = vpop.f32.mrb[0].mxu0
  %v2993 = vpop.f32.mrb[0].mxu0
  %v2994 = vadd.f32 %v2769, %v2993
  %v2995 = vpop.f32.mrb[0].mxu0
  %2996 = vmatprep.mubr.bf16.mxu0 %v2470
  %2997 = vmatmul.mubr.bf16.gmra.mrb[0].mxu0 %v2469
  %v2998 = vpop.f32.mrb[0].mxu0
  %v2999 = vadd.f32 %v2774, %v2998
  %v3000 = vpop.f32.mrb[0].mxu0
  %v3001 = vpop.f32.mrb[0].mxu0
  %v3002 = vadd.f32 %v2777, %v3001
  %v3003 = vpop.f32.mrb[0].mxu0
  %3004 = vmatprep.mubr.bf16.mxu0 %v2474
  %3005 = vmatmul.mubr.bf16.gmra.mrb[0].mxu0 %v2473
  %v3006 = vpop.f32.mrb[0].mxu0
  %v3007 = vadd.f32 %v2782, %v3006
  %v3008 = vpop.f32.mrb[0].mxu0
  %v3009 = vpop.f32.mrb[0].mxu0
  %v3010 = vadd.f32 %v2785, %v3009
  %v3011 = vpop.f32.mrb[0].mxu0
  %3012 = vmatprep.mubr.bf16.mxu0 %v2478
  %3013 = vmatmul.mubr.bf16.gmra.mrb[0].mxu0 %v2477
  %v3014 = vpop.f32.mrb[0].mxu0
  %v3015 = vadd.f32 %v2790, %v3014
  %v3016 = vpop.f32.mrb[0].mxu0
  %v3017 = vpop.f32.mrb[0].mxu0
  %v3018 = vadd.f32 %v2793, %v3017
  %v3019 = vpop.f32.mrb[0].mxu0
  %3020 = vmatprep.mubr.bf16.mxu0 %v2482
  %3021 = vmatmul.mubr.bf16.gmra.mrb[0].mxu0 %v2481
  %v3022 = vpop.f32.mrb[0].mxu0
  %v3023 = vadd.f32 %v2798, %v3022
  %v3024 = vpop.f32.mrb[0].mxu0
  %v3025 = vpop.f32.mrb[0].mxu0
  %v3026 = vadd.f32 %v2801, %v3025
  %v3027 = vpop.f32.mrb[0].mxu0
  %3028 = vdwg.mxu0
  %v3029 = vmax.f32 %v2839, 0.0
  %v3030 = vmax.f32 %v2842, 0.0
  %v3031 = vmax.f32 %v2847, 0.0
  %v3032 = vmax.f32 %v2850, 0.0
  %v3033 = vmax.f32 %v2855, 0.0
  %v3034 = vmax.f32 %v2858, 0.0
  %v3035 = vmax.f32 %v2863, 0.0
  %v3036 = vmax.f32 %v2866, 0.0
  %v3037 = vmax.f32 %v2871, 0.0
  %v3038 = vmax.f32 %v2874, 0.0
  %v3039 = vmax.f32 %v2879, 0.0
  %v3040 = vmax.f32 %v2882, 0.0
  %v3041 = vmax.f32 %v2887, 0.0
  %v3042 = vmax.f32 %v2890, 0.0
  %v3043 = vmax.f32 %v2895, 0.0
  %v3044 = vmax.f32 %v2898, 0.0
  %v3045 = vmax.f32 %v2903, 0.0
  %v3046 = vmax.f32 %v2906, 0.0
  %v3047 = vmax.f32 %v2911, 0.0
  %v3048 = vmax.f32 %v2914, 0.0
  %v3049 = vmax.f32 %v2919, 0.0
  %v3050 = vmax.f32 %v2922, 0.0
  %v3051 = vmax.f32 %v2927, 0.0
  %v3052 = vmax.f32 %v2930, 0.0
  %v3053 = vmax.f32 %v2935, 0.0
  %v3054 = vmax.f32 %v2938, 0.0
  %v3055 = vmax.f32 %v2943, 0.0
  %v3056 = vmax.f32 %v2946, 0.0
  %v3057 = vmax.f32 %v2951, 0.0
  %v3058 = vmax.f32 %v2954, 0.0
  %v3059 = vmax.f32 %v2959, 0.0
  %v3060 = vmax.f32 %v2962, 0.0
  %v3061 = vmax.f32 %v2967, 0.0
  %v3062 = vmax.f32 %v2970, 0.0
  %v3063 = vmax.f32 %v2975, 0.0
  %v3064 = vmax.f32 %v2978, 0.0
  %v3065 = vmax.f32 %v2983, 0.0
  %v3066 = vmax.f32 %v2986, 0.0
  %v3067 = vmax.f32 %v2991, 0.0
  %v3068 = vmax.f32 %v2994, 0.0
  %v3069 = vmax.f32 %v2999, 0.0
  %v3070 = vmax.f32 %v3002, 0.0
  %v3071 = vmax.f32 %v3007, 0.0
  %v3072 = vmax.f32 %v3010, 0.0
  %v3073 = vmax.f32 %v3015, 0.0
  %v3074 = vmax.f32 %v3018, 0.0
  %v3075 = vmax.f32 %v3023, 0.0
  %v3076 = vmax.f32 %v3026, 0.0
  %3077 = vset.pattern.permute.xlu0 1
  %3078 = vperm.xlu0 %3077, %v83
  %v3079 = vpop.permute.xlu0 %3078
  %3081 = vset.pattern.permute.xlu0 1
  %3082 = vperm.xlu0 %3081, %v84
  %v3083 = vpop.permute.xlu0 %3082
  %3085 = vset.pattern.permute.xlu0 1
  %3086 = vperm.xlu0 %3085, %v85
  %v3087 = vpop.permute.xlu0 %3086
  %3089 = vset.pattern.permute.xlu0 1
  %3090 = vperm.xlu0 %3089, %v86
  %v3091 = vpop.permute.xlu0 %3090
  %3093 = vset.pattern.permute.xlu0 1
  %3094 = vperm.xlu0 %3093, %v87
  %v3095 = vpop.permute.xlu0 %3094
  %3097 = vset.pattern.permute.xlu0 1
  %3098 = vperm.xlu0 %3097, %v88
  %v3099 = vpop.permute.xlu0 %3098
  %3101 = vset.pattern.permute.xlu0 1
  %3102 = vperm.xlu0 %3101, %v89
  %v3103 = vpop.permute.xlu0 %3102
  %3105 = vset.pattern.permute.xlu0 1
  %3106 = vperm.xlu0 %3105, %v90
  %v3107 = vpop.permute.xlu0 %3106
  %3109 = vset.pattern.permute.xlu0 1
  %3110 = vperm.xlu0 %3109, %v91
  %v3111 = vpop.permute.xlu0 %3110
  %3113 = vset.pattern.permute.xlu0 1
  %3114 = vperm.xlu0 %3113, %v92
  %v3115 = vpop.permute.xlu0 %3114
  %3117 = vset.pattern.permute.xlu0 1
  %3118 = vperm.xlu0 %3117, %v93
  %v3119 = vpop.permute.xlu0 %3118
  %3121 = vset.pattern.permute.xlu0 1
  %3122 = vperm.xlu0 %3121, %v94
  %v3123 = vpop.permute.xlu0 %3122
  %3125 = vset.pattern.permute.xlu0 1
  %3126 = vperm.xlu0 %3125, %v95
  %v3127 = vpop.permute.xlu0 %3126
  %3129 = vset.pattern.permute.xlu0 1
  %3130 = vperm.xlu0 %3129, %v96
  %v3131 = vpop.permute.xlu0 %3130
  %3133 = vset.pattern.permute.xlu0 1
  %3134 = vperm.xlu0 %3133, %v97
  %v3135 = vpop.permute.xlu0 %3134
  %3137 = vset.pattern.permute.xlu0 1
  %3138 = vperm.xlu0 %3137, %v98
  %v3139 = vpop.permute.xlu0 %3138
  %3141 = vset.pattern.permute.xlu0 1
  %3142 = vperm.xlu0 %3141, %v99
  %v3143 = vpop.permute.xlu0 %3142
  %3145 = vset.pattern.permute.xlu0 1
  %3146 = vperm.xlu0 %3145, %v100
  %v3147 = vpop.permute.xlu0 %3146
  %3149 = vset.pattern.permute.xlu0 1
  %3150 = vperm.xlu0 %3149, %v101
  %v3151 = vpop.permute.xlu0 %3150
  %3153 = vset.pattern.permute.xlu0 1
  %3154 = vperm.xlu0 %3153, %v102
  %v3155 = vpop.permute.xlu0 %3154
  %3157 = vset.pattern.permute.xlu0 1
  %3158 = vperm.xlu0 %3157, %v103
  %v3159 = vpop.permute.xlu0 %3158
  %3161 = vset.pattern.permute.xlu0 1
  %3162 = vperm.xlu0 %3161, %v104
  %v3163 = vpop.permute.xlu0 %3162
  %3165 = vset.pattern.permute.xlu0 1
  %3166 = vperm.xlu0 %3165, %v105
  %v3167 = vpop.permute.xlu0 %3166
  %3169 = vset.pattern.permute.xlu0 1
  %3170 = vperm.xlu0 %3169, %v106
  %v3171 = vpop.permute.xlu0 %3170
  %3173 = vset.pattern.permute.xlu0 1
  %3174 = vperm.xlu0 %3173, %v107
  %v3175 = vpop.permute.xlu0 %3174
  %3177 = vset.pattern.permute.xlu0 1
  %3178 = vperm.xlu0 %3177, %v108
  %v3179 = vpop.permute.xlu0 %3178
  %3181 = vset.pattern.permute.xlu0 1
  %3182 = vperm.xlu0 %3181, %v109
  %v3183 = vpop.permute.xlu0 %3182
  %3185 = vset.pattern.permute.xlu0 1
  %3186 = vperm.xlu0 %3185, %v110
  %v3187 = vpop.permute.xlu0 %3186
  %3189 = vset.pattern.permute.xlu0 1
  %3190 = vperm.xlu0 %3189, %v111
  %v3191 = vpop.permute.xlu0 %3190
  %3193 = vset.pattern.permute.xlu0 1
  %3194 = vperm.xlu0 %3193, %v112
  %v3195 = vpop.permute.xlu0 %3194
  %3197 = vset.pattern.permute.xlu0 1
  %3198 = vperm.xlu0 %3197, %v113
  %v3199 = vpop.permute.xlu0 %3198
  %3201 = vset.pattern.permute.xlu0 1
  %3202 = vperm.xlu0 %3201, %v114
  %v3203 = vpop.permute.xlu0 %3202
  %3205 = vset.pattern.permute.xlu0 1
  %3206 = vperm.xlu0 %3205, %v115
  %v3207 = vpop.permute.xlu0 %3206
  %3209 = vset.pattern.permute.xlu0 1
  %3210 = vperm.xlu0 %3209, %v116
  %v3211 = vpop.permute.xlu0 %3210
  %3213 = vset.pattern.permute.xlu0 1
  %3214 = vperm.xlu0 %3213, %v117
  %v3215 = vpop.permute.xlu0 %3214
  %3217 = vset.pattern.permute.xlu0 1
  %3218 = vperm.xlu0 %3217, %v118
  %v3219 = vpop.permute.xlu0 %3218
  %3221 = vset.pattern.permute.xlu0 1
  %3222 = vperm.xlu0 %3221, %v119
  %v3223 = vpop.permute.xlu0 %3222
  %3225 = vset.pattern.permute.xlu0 1
  %3226 = vperm.xlu0 %3225, %v120
  %v3227 = vpop.permute.xlu0 %3226
  %3229 = vset.pattern.permute.xlu0 1
  %3230 = vperm.xlu0 %3229, %v121
  %v3231 = vpop.permute.xlu0 %3230
  %3233 = vset.pattern.permute.xlu0 1
  %3234 = vperm.xlu0 %3233, %v122
  %v3235 = vpop.permute.xlu0 %3234
  %3237 = vset.pattern.permute.xlu0 1
  %3238 = vperm.xlu0 %3237, %v123
  %v3239 = vpop.permute.xlu0 %3238
  %3241 = vset.pattern.permute.xlu0 1
  %3242 = vperm.xlu0 %3241, %v124
  %v3243 = vpop.permute.xlu0 %3242
  %3245 = vset.pattern.permute.xlu0 1
  %3246 = vperm.xlu0 %3245, %v125
  %v3247 = vpop.permute.xlu0 %3246
  %3249 = vset.pattern.permute.xlu0 1
  %3250 = vperm.xlu0 %3249, %v126
  %v3251 = vpop.permute.xlu0 %3250
  %3253 = vset.pattern.permute.xlu0 1
  %3254 = vperm.xlu0 %3253, %v127
  %v3255 = vpop.permute.xlu0 %3254
  %3257 = vset.pattern.permute.xlu0 1
  %3258 = vperm.xlu0 %3257, %v128
  %v3259 = vpop.permute.xlu0 %3258
  %3261 = vset.pattern.permute.xlu0 1
  %3262 = vperm.xlu0 %3261, %v129
  %v3263 = vpop.permute.xlu0 %3262
  %3265 = vset.pattern.permute.xlu0 1
  %3266 = vperm.xlu0 %3265, %v130
  %v3267 = vpop.permute.xlu0 %3266
  %v3269 = vmul.f32 %v3079, %v3029
  %v3270 = vmul.f32 %v3083, %v3030
  %v3271 = vmul.f32 %v3087, %v3031
  %v3272 = vmul.f32 %v3091, %v3032
  %v3273 = vmul.f32 %v3095, %v3033
  %v3274 = vmul.f32 %v3099, %v3034
  %v3275 = vmul.f32 %v3103, %v3035
  %v3276 = vmul.f32 %v3107, %v3036
  %v3277 = vmul.f32 %v3111, %v3037
  %v3278 = vmul.f32 %v3115, %v3038
  %v3279 = vmul.f32 %v3119, %v3039
  %v3280 = vmul.f32 %v3123, %v3040
  %v3281 = vmul.f32 %v3127, %v3041
  %v3282 = vmul.f32 %v3131, %v3042
  %v3283 = vmul.f32 %v3135, %v3043
  %v3284 = vmul.f32 %v3139, %v3044
  %v3285 = vmul.f32 %v3143, %v3045
  %v3286 = vmul.f32 %v3147, %v3046
  %v3287 = vmul.f32 %v3151, %v3047
  %v3288 = vmul.f32 %v3155, %v3048
  %v3289 = vmul.f32 %v3159, %v3049
  %v3290 = vmul.f32 %v3163, %v3050
  %v3291 = vmul.f32 %v3167, %v3051
  %v3292 = vmul.f32 %v3171, %v3052
  %v3293 = vmul.f32 %v3175, %v3053
  %v3294 = vmul.f32 %v3179, %v3054
  %v3295 = vmul.f32 %v3183, %v3055
  %v3296 = vmul.f32 %v3187, %v3056
  %v3297 = vmul.f32 %v3191, %v3057
  %v3298 = vmul.f32 %v3195, %v3058
  %v3299 = vmul.f32 %v3199, %v3059
  %v3300 = vmul.f32 %v3203, %v3060
  %v3301 = vmul.f32 %v3207, %v3061
  %v3302 = vmul.f32 %v3211, %v3062
  %v3303 = vmul.f32 %v3215, %v3063
  %v3304 = vmul.f32 %v3219, %v3064
  %v3305 = vmul.f32 %v3223, %v3065
  %v3306 = vmul.f32 %v3227, %v3066
  %v3307 = vmul.f32 %v3231, %v3067
  %v3308 = vmul.f32 %v3235, %v3068
  %v3309 = vmul.f32 %v3239, %v3069
  %v3310 = vmul.f32 %v3243, %v3070
  %v3311 = vmul.f32 %v3247, %v3071
  %v3312 = vmul.f32 %v3251, %v3072
  %v3313 = vmul.f32 %v3255, %v3073
  %v3314 = vmul.f32 %v3259, %v3074
  %v3315 = vmul.f32 %v3263, %v3075
  %v3316 = vmul.f32 %v3267, %v3076
  %v3317 = vadd.f32 %v3269, %v3270
  %v3318 = vadd.f32 %v3317, %v3271
  %v3319 = vadd.f32 %v3318, %v3272
  %v3320 = vadd.f32 %v3319, %v3273
  %v3321 = vadd.f32 %v3320, %v3274
  %v3322 = vadd.f32 %v3321, %v3275
  %v3323 = vadd.f32 %v3322, %v3276
  %v3324 = vadd.f32 %v3323, %v3277
  %v3325 = vadd.f32 %v3324, %v3278
  %v3326 = vadd.f32 %v3325, %v3279
  %v3327 = vadd.f32 %v3326, %v3280
  %v3328 = vadd.f32 %v3327, %v3281
  %v3329 = vadd.f32 %v3328, %v3282
  %v3330 = vadd.f32 %v3329, %v3283
  %v3331 = vadd.f32 %v3330, %v3284
  %v3332 = vadd.f32 %v3331, %v3285
  %v3333 = vadd.f32 %v3332, %v3286
  %v3334 = vadd.f32 %v3333, %v3287
  %v3335 = vadd.f32 %v3334, %v3288
  %v3336 = vadd.f32 %v3335, %v3289
  %v3337 = vadd.f32 %v3336, %v3290
  %v3338 = vadd.f32 %v3337, %v3291
  %v3339 = vadd.f32 %v3338, %v3292
  %v3340 = vadd.f32 %v3339, %v3293
  %v3341 = vadd.f32 %v3340, %v3294
  %v3342 = vadd.f32 %v3341, %v3295
  %v3343 = vadd.f32 %v3342, %v3296
  %v3344 = vadd.f32 %v3343, %v3297
  %v3345 = vadd.f32 %v3344, %v3298
  %v3346 = vadd.f32 %v3345, %v3299
  %v3347 = vadd.f32 %v3346, %v3300
  %v3348 = vadd.f32 %v3347, %v3301
  %v3349 = vadd.f32 %v3348, %v3302
  %v3350 = vadd.f32 %v3349, %v3303
  %v3351 = vadd.f32 %v3350, %v3304
  %v3352 = vadd.f32 %v3351, %v3305
  %v3353 = vadd.f32 %v3352, %v3306
  %v3354 = vadd.f32 %v3353, %v3307
  %v3355 = vadd.f32 %v3354, %v3308
  %v3356 = vadd.f32 %v3355, %v3309
  %v3357 = vadd.f32 %v3356, %v3310
  %v3358 = vadd.f32 %v3357, %v3311
  %v3359 = vadd.f32 %v3358, %v3312
  %v3360 = vadd.f32 %v3359, %v3313
  %v3361 = vadd.f32 %v3360, %v3314
  %v3362 = vadd.f32 %v3361, %v3315
  %v3363 = vadd.f32 %v3362, %v3316
  %v3364 = vrot.slane %v3363, 4
  %v3365 = vadd.f32 %v3363, %v3364
  %v3366 = vrot.slane %v3365, 2
  %v3367 = vadd.f32 %v3365, %v3366
  %v3368 = vrot.slane %v3367, 1
  %v3369 = vadd.f32 %v3367, %v3368
  %3370 = vset.pattern.permute.xlu0 2
  %3371 = vperm.xlu0 %3370, %v83
  %v3372 = vpop.permute.xlu0 %3371
  %v3374 = vadd.f32 %v3369, %v3372
  %3375 = vst [vmem:[%s4] sm:$0x1] %v3374
  // Predicated region
  $region18: #{_lambda_.1} parent=0 // pred_check
    _
  $region19: #{_lambda_.1} parent=0 // pred_check_branch
    %3377 = sbr.rel (0) target = $region21
  $region20: #{_lambda_.1} parent=0 // pred_region
    _
  $region21: #{_lambda_.1} parent=0 // pred_fallthru
    _
  // Predicated region
  $region22: #{_lambda_.1} parent=0 // pred_check
    _
  $region23: #{_lambda_.1} parent=0 // pred_check_branch
    %3379 = sbr.rel (0) target = $region25
  $region24: #{_lambda_.1} parent=0 // pred_region
    _
  $region25: #{_lambda_.1} parent=0 // pred_fallthru
    _

</llo_original>
